<compile_context>
chip_gen: v5e
topology: v5e:2x2
jax: 0.10.0
libtpu: 0.0.40
codegen_flags: <defaults>
</compile_context>

<pallas_src>
import functools

import jax
import jax.numpy as jnp
from jax import lax
from jax.experimental import pallas as pl
from jax.experimental.pallas import tpu as pltpu

KS = 3            # kernel size (module default)
PAD = 1           # padding     (module default)
LANES = 128       # TPU lane width -> lane-dense output-channel padding
_VMEM_TILE_BUDGET = 24 * 1024 * 1024   # per-step sizing target (v7x: 64 MiB physical VMEM)
_VMEM_LIMIT_BYTES = 48 * 1024 * 1024   # explicit scoped-VMEM limit, safe on v5e/v6e/v7x


def _round_up(x, m):
    return (x + m - 1) // m * m


def _conv3x3_bn_relu_kernel(x_ref, top_ref, bot_ref, w_ref, b_ref, o_ref,
                            xpad_ref, acc_ref, *, th, width, cin, cout_p, mxu_dtype):
    """One (batch, row-tile) step: 3x3 conv (stride 1, 'same') + folded BN + ReLU.

    x_ref   : (1, th, width, cin)        row tile of the input (compute dtype)
    top_ref : (1, 1, width, cin)         halo row above the tile (zeros at the border)
    bot_ref : (1, 1, width, cin)         halo row below the tile (zeros at the border)
    w_ref   : (9, cin, cout_p)           BN-scale-folded weights, tap-major (resident)
    b_ref   : (1, cout_p)                folded BN bias, f32 (resident)
    o_ref   : (1, th, width, cout_p)     lane-dense output tile
    xpad_ref: (th+2, width+2, cin) f32   VMEM scratch: haloed + width-padded tile
    acc_ref : (th*width, cout_p)   f32   VMEM scratch: accumulator
    """
    # --- assemble the haloed, zero-padded tile in the VMEM scratch ----------------
    zcol = jnp.zeros((th + 2, 1, cin), jnp.float32)
    xpad_ref[:, 0:1, :] = zcol
    xpad_ref[:, width + 1:width + 2, :] = zcol
    xpad_ref[0:1, 1:width + 1, :] = top_ref[0].astype(jnp.float32)
    xpad_ref[1:th + 1, 1:width + 1, :] = x_ref[0].astype(jnp.float32)
    xpad_ref[th + 1:th + 2, 1:width + 1, :] = bot_ref[0].astype(jnp.float32)

    # --- 9-tap conv as MXU matmuls: 3 width-shift relayouts, 9 aligned row views ---
    first = True
    for dw in range(KS):
        slab = xpad_ref[:, dw:dw + width, :].reshape((th + 2) * width, cin)
        slab = slab.astype(mxu_dtype)
        for dh in range(KS):
            lhs = slab[dh * width:(dh + th) * width]              # (th*width, cin)
            contrib = jnp.dot(lhs, w_ref[dh * KS + dw],
                              preferred_element_type=jnp.float32)
            if first:
                acc_ref[...] = contrib
                first = False
            else:
                acc_ref[...] += contrib

    # --- folded-BN bias + ReLU (f32 epilogue), lane-dense store --------------------
    y = jnp.maximum(acc_ref[...] + b_ref[...], 0.0)
    o_ref[0] = y.reshape(th, width, cout_p).astype(o_ref.dtype)


def _choose_tile_rows(h, width, cin, cout_p, itemsize, budget=_VMEM_TILE_BUDGET):
    """Largest row tile whose double-buffered blocks + scratch fit the VMEM budget."""
    def per_step_bytes(th):
        blk_x = th * width * cin * itemsize
        blk_halo = 2 * width * cin * itemsize
        blk_out = th * width * cout_p * itemsize
        resident = KS * KS * cin * cout_p * itemsize + cout_p * 4
        scratch = (th + 2) * (width + 2) * cin * 4 + th * width * cout_p * 4
        return 2 * (blk_x + blk_halo + blk_out) + resident + scratch

    for th in (128, 64, 32, 16, 8):
        if h % th == 0 and per_step_bytes(th) <= budget:
            return th
    # TODO(synk): pad ragged H instead of falling back to a whole-image tile.
    return h


def conv3x3_bn_relu(x_nhwc, w_hwio, scale, bias, *, tile_rows=None,
                    compute_dtype=jnp.float32):
    """3x3 'same' conv + folded eval-mode BN + ReLU.

    x_nhwc: (N, H, W, Cin_x)  (Cin_x may already carry zero-padded channels)
    w_hwio: (3, 3, Cin_w, Cout) with Cin_w <= Cin_x
    Returns (N, H, W, Cout_p) in compute_dtype, Cout_p = round_up(Cout, 128);
    the padded output channels are exactly zero.
    """
    n, h, width, cin = x_nhwc.shape
    kh, kw, cin_w, cout = w_hwio.shape
    assert (kh, kw) == (KS, KS), "only the module-default 3x3 kernel is implemented"
    assert cin_w <= cin
    cout_p = _round_up(cout, LANES)

    # Fold BN scale into the weights; zero-pad K (input ch) and N (output ch, lane-dense).
    w_folded = (w_hwio * scale[None, None, None, :]).reshape(KS * KS, cin_w, cout)
    w_k = jnp.zeros((KS * KS, cin, cout_p), compute_dtype)
    w_k = w_k.at[:, :cin_w, :cout].set(w_folded.astype(compute_dtype))
    b_k = jnp.zeros((1, cout_p), jnp.float32).at[0, :cout].set(bias.astype(jnp.float32))

    itemsize = jnp.dtype(compute_dtype).itemsize
    th = tile_rows if tile_rows is not None else _choose_tile_rows(h, width, cin,
                                                                   cout_p, itemsize)
    th = min(th, h)
    if h % th != 0:
        th = h
    n_th = h // th

    x_c = x_nhwc.astype(compute_dtype)
    # Tiny per-tile halo rows (2 rows / tile) instead of a full-image jnp.pad round trip.
    zrow = jnp.zeros((n, 1, width, cin), compute_dtype)
    x_top = jnp.concatenate([zrow, x_c[:, th - 1:h - 1:th]], axis=1)   # (n, n_th, W, Cin)
    x_bot = jnp.concatenate([x_c[:, th:h:th], zrow], axis=1)           # (n, n_th, W, Cin)

    kernel = functools.partial(_conv3x3_bn_relu_kernel, th=th, width=width, cin=cin,
                               cout_p=cout_p, mxu_dtype=compute_dtype)

    return pl.pallas_call(
        kernel,
        out_shape=jax.ShapeDtypeStruct((n, h, width, cout_p), compute_dtype),
        grid_spec=pltpu.PrefetchScalarGridSpec(
            num_scalar_prefetch=0,
            grid=(n, n_th),
            in_specs=[
                pl.BlockSpec((1, th, width, cin), lambda b, i: (b, i, 0, 0)),
                pl.BlockSpec((1, 1, width, cin), lambda b, i: (b, i, 0, 0)),
                pl.BlockSpec((1, 1, width, cin), lambda b, i: (b, i, 0, 0)),
                pl.BlockSpec((KS * KS, cin, cout_p), lambda b, i: (0, 0, 0)),
                pl.BlockSpec((1, cout_p), lambda b, i: (0, 0)),
            ],
            out_specs=pl.BlockSpec((1, th, width, cout_p), lambda b, i: (b, i, 0, 0)),
            scratch_shapes=[
                pltpu.VMEM((th + 2, width + 2, cin), jnp.float32),
                pltpu.VMEM((th * width, cout_p), jnp.float32),
            ]),
        compiler_params=pltpu.CompilerParams(
            dimension_semantics=("parallel", "parallel"),
            vmem_limit_bytes=_VMEM_LIMIT_BYTES),
    )(x_c, x_top, x_bot, w_k, b_k)


def fold_bn(p, eps=1e-5):
    scale = p["gamma"] / jnp.sqrt(p["var"] + eps)
    bias = (p["b"] - p["mean"]) * scale + p["beta"]
    return scale, bias


def unet_conv2_forward(x_nchw, params, *, tile_rows=None, compute_dtype=jnp.float32):
    """Matches UNetConv2.forward (is_batchnorm=True, eval-mode BN). NCHW in / out."""
    x = jnp.transpose(x_nchw, (0, 2, 3, 1))             # NCHW -> NHWC
    for p in params:
        scale, bias = fold_bn(p)
        x = conv3x3_bn_relu(x, p["w"], scale, bias,
                            tile_rows=tile_rows, compute_dtype=compute_dtype)
    cout = params[-1]["w"].shape[-1]
    x = x[..., :cout].astype(jnp.float32)                # drop lane-padding channels
    return jnp.transpose(x, (0, 3, 1, 2))                # NHWC -> NCHW


def make_params(key, in_size, out_size, n=2):
    """Deterministic synthetic parameters for the n conv blocks."""
    params = []
    cin = in_size
    for _ in range(n):
        key, kw, kb, kg, kbeta, km, kv = jax.random.split(key, 7)
        fan_in = cin * KS * KS
        w = jax.random.normal(kw, (KS, KS, cin, out_size), jnp.float32) * (2.0 / fan_in) ** 0.5
        b = jax.random.normal(kb, (out_size,), jnp.float32) * 0.01
        gamma = 1.0 + 0.1 * jax.random.normal(kg, (out_size,), jnp.float32)
        beta = 0.1 * jax.random.normal(kbeta, (out_size,), jnp.float32)
        mean = 0.1 * jax.random.normal(km, (out_size,), jnp.float32)
        var = jnp.abs(jax.random.normal(kv, (out_size,), jnp.float32)) + 0.5
        params.append(dict(w=w, b=b, gamma=gamma, beta=beta, mean=mean, var=var))
        cin = out_size
    return params


def _reference_forward(x_nchw, params, eps=1e-5):
    """Pure-JAX reference (lax conv) for the correctness check."""
    x = x_nchw
    for p in params:
        w_oihw = jnp.transpose(p["w"], (3, 2, 0, 1))      # HWIO -> OIHW
        y = lax.conv_general_dilated(
            x, w_oihw, window_strides=(1, 1), padding=((PAD, PAD), (PAD, PAD)),
            dimension_numbers=("NCHW", "OIHW", "NCHW"))
        y = y + p["b"][None, :, None, None]
        y = (y - p["mean"][None, :, None, None]) / jnp.sqrt(p["var"] + eps)[None, :, None, None]
        y = y * p["gamma"][None, :, None, None] + p["beta"][None, :, None, None]
        x = jnp.maximum(y, 0.0)
    return x


if __name__ == "__main__":
    key = jax.random.PRNGKey(0)
    k_x, k_p = jax.random.split(key)

    N, C_in, H, W = 2, 4, 16, 16
    C_out = 8

    x = jax.random.normal(k_x, (N, C_in, H, W), jnp.float32)
    params = make_params(k_p, C_in, C_out, n=2)
    ref = _reference_forward(x, params)

    # f32 path, tile_rows=8 -> 2 row tiles per image (exercises halo handling).
    out = jax.block_until_ready(unet_conv2_forward(x, params, tile_rows=8))
    assert out.shape == (N, C_out, H, W)
    assert jnp.allclose(out, ref, atol=1e-4, rtol=1e-4), (
        f"f32 max abs err {jnp.max(jnp.abs(out - ref))}")

    # bf16 path (halved HBM traffic), auto tile selection; loose tolerance.
    out_bf16 = jax.block_until_ready(
        unet_conv2_forward(x, params, compute_dtype=jnp.bfloat16))
    assert out_bf16.shape == (N, C_out, H, W)
    assert float(jnp.max(jnp.abs(out_bf16 - ref))) < 0.25, (
        f"bf16 max abs err {jnp.max(jnp.abs(out_bf16 - ref))}")

    print("KERNEL_OK")
</pallas_src>

<mosaic_0001>
module attributes {stable_mosaic.version = 11 : i64} {
  func.func @_conv3x3_bn_relu_kernel(%arg0: i32, %arg1: i32, %arg2: memref<1x8x16x4xf32, #tpu.memory_space<vmem>>, %arg3: memref<1x1x16x4xf32, #tpu.memory_space<vmem>>, %arg4: memref<1x1x16x4xf32, #tpu.memory_space<vmem>>, %arg5: memref<9x4x128xf32, #tpu.memory_space<vmem>>, %arg6: memref<1x128xf32, #tpu.memory_space<vmem>>, %arg7: memref<1x8x16x128xf32, #tpu.memory_space<vmem>>, %arg8: memref<10x18x4xf32, #tpu.memory_space<vmem>>, %arg9: memref<128x128xf32, #tpu.memory_space<vmem>>) attributes {dimension_semantics = [#tpu.dimension_semantics<parallel>, #tpu.dimension_semantics<parallel>], iteration_bounds = array<i64: 2, 2>, scalar_prefetch = 0 : i64, scratch_operands = 2 : i64, tpu.core_type = #tpu.core_type<tc>, window_params = [{transform_indices = @transform_0, window_bounds = array<i64: 1, 8, 16, 4>}, {transform_indices = @transform_1, window_bounds = array<i64: 1, 1, 16, 4>}, {transform_indices = @transform_2, window_bounds = array<i64: 1, 1, 16, 4>}, {pipeline_mode = #tpu.pipeline_mode<synchronous>, transform_indices = @transform_3, window_bounds = array<i64: 9, 4, 128>}, {pipeline_mode = #tpu.pipeline_mode<synchronous>, transform_indices = @transform_4, window_bounds = array<i64: 1, 128>}, {transform_indices = @transform_5, window_bounds = array<i64: 1, 8, 16, 128>}]} {
    %cst = arith.constant 0.000000e+00 : f32
    %0 = vector.broadcast %cst : f32 to vector<10x1x4xf32>
    %c0 = arith.constant 0 : index
    %c0_0 = arith.constant 0 : index
    %c0_1 = arith.constant 0 : index
    %1 = vector.load %arg8[%c0, %c0_0, %c0_1] : memref<10x18x4xf32, #tpu.memory_space<vmem>>, vector<10x1x4xf32>
    tpu.vector_store %arg8[%c0, %c0_0, %c0_1], %0 {strides = array<i32>} : memref<10x18x4xf32, #tpu.memory_space<vmem>>, vector<10x1x4xf32>,
    %c0_2 = arith.constant 0 : index
    %c17 = arith.constant 17 : index
    %c0_3 = arith.constant 0 : index
    %2 = vector.load %arg8[%c0_2, %c17, %c0_3] : memref<10x18x4xf32, #tpu.memory_space<vmem>>, vector<10x1x4xf32>
    tpu.vector_store %arg8[%c0_2, %c17, %c0_3], %0 {strides = array<i32>} : memref<10x18x4xf32, #tpu.memory_space<vmem>>, vector<10x1x4xf32>,
    %c0_4 = arith.constant 0 : index
    %c0_5 = arith.constant 0 : index
    %c0_6 = arith.constant 0 : index
    %c0_7 = arith.constant 0 : index
    %3 = vector.load %arg3[%c0_4, %c0_5, %c0_6, %c0_7] : memref<1x1x16x4xf32, #tpu.memory_space<vmem>>, vector<1x1x16x4xf32>
    %4 = vector.shape_cast %3 : vector<1x1x16x4xf32> to vector<1x16x4xf32>
    %c0_8 = arith.constant 0 : index
    %c1 = arith.constant 1 : index
    %c0_9 = arith.constant 0 : index
    %5 = vector.load %arg8[%c0_8, %c1, %c0_9] : memref<10x18x4xf32, #tpu.memory_space<vmem>>, vector<1x16x4xf32>
    tpu.vector_store %arg8[%c0_8, %c1, %c0_9], %4 {strides = array<i32>} : memref<10x18x4xf32, #tpu.memory_space<vmem>>, vector<1x16x4xf32>,
    %c0_10 = arith.constant 0 : index
    %c0_11 = arith.constant 0 : index
    %c0_12 = arith.constant 0 : index
    %c0_13 = arith.constant 0 : index
    %6 = vector.load %arg2[%c0_10, %c0_11, %c0_12, %c0_13] : memref<1x8x16x4xf32, #tpu.memory_space<vmem>>, vector<1x8x16x4xf32>
    %7 = vector.shape_cast %6 : vector<1x8x16x4xf32> to vector<8x16x4xf32>
    %c1_14 = arith.constant 1 : index
    %c1_15 = arith.constant 1 : index
    %c0_16 = arith.constant 0 : index
    %8 = vector.load %arg8[%c1_14, %c1_15, %c0_16] : memref<10x18x4xf32, #tpu.memory_space<vmem>>, vector<8x16x4xf32>
    tpu.vector_store %arg8[%c1_14, %c1_15, %c0_16], %7 {strides = array<i32>} : memref<10x18x4xf32, #tpu.memory_space<vmem>>, vector<8x16x4xf32>,
    %c0_17 = arith.constant 0 : index
    %c0_18 = arith.constant 0 : index
    %c0_19 = arith.constant 0 : index
    %c0_20 = arith.constant 0 : index
    %9 = vector.load %arg4[%c0_17, %c0_18, %c0_19, %c0_20] : memref<1x1x16x4xf32, #tpu.memory_space<vmem>>, vector<1x1x16x4xf32>
    %10 = vector.shape_cast %9 : vector<1x1x16x4xf32> to vector<1x16x4xf32>
    %c9 = arith.constant 9 : index
    %c1_21 = arith.constant 1 : index
    %c0_22 = arith.constant 0 : index
    %11 = vector.load %arg8[%c9, %c1_21, %c0_22] : memref<10x18x4xf32, #tpu.memory_space<vmem>>, vector<1x16x4xf32>
    tpu.vector_store %arg8[%c9, %c1_21, %c0_22], %10 {strides = array<i32>} : memref<10x18x4xf32, #tpu.memory_space<vmem>>, vector<1x16x4xf32>,
    %c0_23 = arith.constant 0 : index
    %c0_24 = arith.constant 0 : index
    %c0_25 = arith.constant 0 : index
    %12 = vector.load %arg8[%c0_23, %c0_24, %c0_25] : memref<10x18x4xf32, #tpu.memory_space<vmem>>, vector<10x16x4xf32>
    %13 = vector.shape_cast %12 : vector<10x16x4xf32> to vector<160x4xf32>
    %14 = vector.extract_strided_slice %13 {offsets = [0, 0], sizes = [128, 4], strides = [1, 1]} : vector<160x4xf32> to vector<128x4xf32>
    %c0_26 = arith.constant 0 : index
    %c0_27 = arith.constant 0 : index
    %c0_28 = arith.constant 0 : index
    %15 = vector.load %arg5[%c0_26, %c0_27, %c0_28] : memref<9x4x128xf32, #tpu.memory_space<vmem>>, vector<1x4x128xf32>
    %16 = vector.shape_cast %15 : vector<1x4x128xf32> to vector<4x128xf32>
    %cst_29 = arith.constant dense<0.000000e+00> : vector<128x128xf32>
    %17 = tpu.matmul %14, %16, %cst_29 {dimension_numbers = #tpu.dot_dimension_numbers<[1], [0], [0], [1], [0, 0, 1, 1], [], []>} : vector<128x4xf32>, vector<4x128xf32>, vector<128x128xf32> -> vector<128x128xf32>
    %c0_30 = arith.constant 0 : index
    %c0_31 = arith.constant 0 : index
    %18 = vector.load %arg9[%c0_30, %c0_31] : memref<128x128xf32, #tpu.memory_space<vmem>>, vector<128x128xf32>
    tpu.vector_store %arg9[%c0_30, %c0_31], %17 {strides = array<i32>} : memref<128x128xf32, #tpu.memory_space<vmem>>, vector<128x128xf32>,
    %19 = vector.extract_strided_slice %13 {offsets = [16, 0], sizes = [128, 4], strides = [1, 1]} : vector<160x4xf32> to vector<128x4xf32>
    %c3 = arith.constant 3 : index
    %c0_32 = arith.constant 0 : index
    %c0_33 = arith.constant 0 : index
    %20 = vector.load %arg5[%c3, %c0_32, %c0_33] : memref<9x4x128xf32, #tpu.memory_space<vmem>>, vector<1x4x128xf32>
    %21 = vector.shape_cast %20 : vector<1x4x128xf32> to vector<4x128xf32>
    %cst_34 = arith.constant dense<0.000000e+00> : vector<128x128xf32>
    %22 = tpu.matmul %19, %21, %cst_34 {dimension_numbers = #tpu.dot_dimension_numbers<[1], [0], [0], [1], [0, 0, 1, 1], [], []>} : vector<128x4xf32>, vector<4x128xf32>, vector<128x128xf32> -> vector<128x128xf32>
    %c0_35 = arith.constant 0 : index
    %c0_36 = arith.constant 0 : index
    %23 = vector.load %arg9[%c0_35, %c0_36] : memref<128x128xf32, #tpu.memory_space<vmem>>, vector<128x128xf32>
    %24 = arith.addf %23, %22 : vector<128x128xf32>
    %c0_37 = arith.constant 0 : index
    %c0_38 = arith.constant 0 : index
    %25 = vector.load %arg9[%c0_37, %c0_38] : memref<128x128xf32, #tpu.memory_space<vmem>>, vector<128x128xf32>
    tpu.vector_store %arg9[%c0_37, %c0_38], %24 {strides = array<i32>} : memref<128x128xf32, #tpu.memory_space<vmem>>, vector<128x128xf32>,
    %26 = vector.extract_strided_slice %13 {offsets = [32, 0], sizes = [128, 4], strides = [1, 1]} : vector<160x4xf32> to vector<128x4xf32>
    %c6 = arith.constant 6 : index
    %c0_39 = arith.constant 0 : index
    %c0_40 = arith.constant 0 : index
    %27 = vector.load %arg5[%c6, %c0_39, %c0_40] : memref<9x4x128xf32, #tpu.memory_space<vmem>>, vector<1x4x128xf32>
    %28 = vector.shape_cast %27 : vector<1x4x128xf32> to vector<4x128xf32>
    %cst_41 = arith.constant dense<0.000000e+00> : vector<128x128xf32>
    %29 = tpu.matmul %26, %28, %cst_41 {dimension_numbers = #tpu.dot_dimension_numbers<[1], [0], [0], [1], [0, 0, 1, 1], [], []>} : vector<128x4xf32>, vector<4x128xf32>, vector<128x128xf32> -> vector<128x128xf32>
    %c0_42 = arith.constant 0 : index
    %c0_43 = arith.constant 0 : index
    %30 = vector.load %arg9[%c0_42, %c0_43] : memref<128x128xf32, #tpu.memory_space<vmem>>, vector<128x128xf32>
    %31 = arith.addf %30, %29 : vector<128x128xf32>
    %c0_44 = arith.constant 0 : index
    %c0_45 = arith.constant 0 : index
    %32 = vector.load %arg9[%c0_44, %c0_45] : memref<128x128xf32, #tpu.memory_space<vmem>>, vector<128x128xf32>
    tpu.vector_store %arg9[%c0_44, %c0_45], %31 {strides = array<i32>} : memref<128x128xf32, #tpu.memory_space<vmem>>, vector<128x128xf32>,
    %c0_46 = arith.constant 0 : index
    %c1_47 = arith.constant 1 : index
    %c0_48 = arith.constant 0 : index
    %33 = vector.load %arg8[%c0_46, %c1_47, %c0_48] : memref<10x18x4xf32, #tpu.memory_space<vmem>>, vector<10x16x4xf32>
    %34 = vector.shape_cast %33 : vector<10x16x4xf32> to vector<160x4xf32>
    %35 = vector.extract_strided_slice %34 {offsets = [0, 0], sizes = [128, 4], strides = [1, 1]} : vector<160x4xf32> to vector<128x4xf32>
    %c1_49 = arith.constant 1 : index
    %c0_50 = arith.constant 0 : index
    %c0_51 = arith.constant 0 : index
    %36 = vector.load %arg5[%c1_49, %c0_50, %c0_51] : memref<9x4x128xf32, #tpu.memory_space<vmem>>, vector<1x4x128xf32>
    %37 = vector.shape_cast %36 : vector<1x4x128xf32> to vector<4x128xf32>
    %cst_52 = arith.constant dense<0.000000e+00> : vector<128x128xf32>
    %38 = tpu.matmul %35, %37, %cst_52 {dimension_numbers = #tpu.dot_dimension_numbers<[1], [0], [0], [1], [0, 0, 1, 1], [], []>} : vector<128x4xf32>, vector<4x128xf32>, vector<128x128xf32> -> vector<128x128xf32>
    %c0_53 = arith.constant 0 : index
    %c0_54 = arith.constant 0 : index
    %39 = vector.load %arg9[%c0_53, %c0_54] : memref<128x128xf32, #tpu.memory_space<vmem>>, vector<128x128xf32>
    %40 = arith.addf %39, %38 : vector<128x128xf32>
    %c0_55 = arith.constant 0 : index
    %c0_56 = arith.constant 0 : index
    %41 = vector.load %arg9[%c0_55, %c0_56] : memref<128x128xf32, #tpu.memory_space<vmem>>, vector<128x128xf32>
    tpu.vector_store %arg9[%c0_55, %c0_56], %40 {strides = array<i32>} : memref<128x128xf32, #tpu.memory_space<vmem>>, vector<128x128xf32>,
    %42 = vector.extract_strided_slice %34 {offsets = [16, 0], sizes = [128, 4], strides = [1, 1]} : vector<160x4xf32> to vector<128x4xf32>
    %c4 = arith.constant 4 : index
    %c0_57 = arith.constant 0 : index
    %c0_58 = arith.constant 0 : index
    %43 = vector.load %arg5[%c4, %c0_57, %c0_58] : memref<9x4x128xf32, #tpu.memory_space<vmem>>, vector<1x4x128xf32>
    %44 = vector.shape_cast %43 : vector<1x4x128xf32> to vector<4x128xf32>
    %cst_59 = arith.constant dense<0.000000e+00> : vector<128x128xf32>
    %45 = tpu.matmul %42, %44, %cst_59 {dimension_numbers = #tpu.dot_dimension_numbers<[1], [0], [0], [1], [0, 0, 1, 1], [], []>} : vector<128x4xf32>, vector<4x128xf32>, vector<128x128xf32> -> vector<128x128xf32>
    %c0_60 = arith.constant 0 : index
    %c0_61 = arith.constant 0 : index
    %46 = vector.load %arg9[%c0_60, %c0_61] : memref<128x128xf32, #tpu.memory_space<vmem>>, vector<128x128xf32>
    %47 = arith.addf %46, %45 : vector<128x128xf32>
    %c0_62 = arith.constant 0 : index
    %c0_63 = arith.constant 0 : index
    %48 = vector.load %arg9[%c0_62, %c0_63] : memref<128x128xf32, #tpu.memory_space<vmem>>, vector<128x128xf32>
    tpu.vector_store %arg9[%c0_62, %c0_63], %47 {strides = array<i32>} : memref<128x128xf32, #tpu.memory_space<vmem>>, vector<128x128xf32>,
    %49 = vector.extract_strided_slice %34 {offsets = [32, 0], sizes = [128, 4], strides = [1, 1]} : vector<160x4xf32> to vector<128x4xf32>
    %c7 = arith.constant 7 : index
    %c0_64 = arith.constant 0 : index
    %c0_65 = arith.constant 0 : index
    %50 = vector.load %arg5[%c7, %c0_64, %c0_65] : memref<9x4x128xf32, #tpu.memory_space<vmem>>, vector<1x4x128xf32>
    %51 = vector.shape_cast %50 : vector<1x4x128xf32> to vector<4x128xf32>
    %cst_66 = arith.constant dense<0.000000e+00> : vector<128x128xf32>
    %52 = tpu.matmul %49, %51, %cst_66 {dimension_numbers = #tpu.dot_dimension_numbers<[1], [0], [0], [1], [0, 0, 1, 1], [], []>} : vector<128x4xf32>, vector<4x128xf32>, vector<128x128xf32> -> vector<128x128xf32>
    %c0_67 = arith.constant 0 : index
    %c0_68 = arith.constant 0 : index
    %53 = vector.load %arg9[%c0_67, %c0_68] : memref<128x128xf32, #tpu.memory_space<vmem>>, vector<128x128xf32>
    %54 = arith.addf %53, %52 : vector<128x128xf32>
    %c0_69 = arith.constant 0 : index
    %c0_70 = arith.constant 0 : index
    %55 = vector.load %arg9[%c0_69, %c0_70] : memref<128x128xf32, #tpu.memory_space<vmem>>, vector<128x128xf32>
    tpu.vector_store %arg9[%c0_69, %c0_70], %54 {strides = array<i32>} : memref<128x128xf32, #tpu.memory_space<vmem>>, vector<128x128xf32>,
    %c0_71 = arith.constant 0 : index
    %c2 = arith.constant 2 : index
    %c0_72 = arith.constant 0 : index
    %56 = vector.load %arg8[%c0_71, %c2, %c0_72] : memref<10x18x4xf32, #tpu.memory_space<vmem>>, vector<10x16x4xf32>
    %57 = vector.shape_cast %56 : vector<10x16x4xf32> to vector<160x4xf32>
    %58 = vector.extract_strided_slice %57 {offsets = [0, 0], sizes = [128, 4], strides = [1, 1]} : vector<160x4xf32> to vector<128x4xf32>
    %c2_73 = arith.constant 2 : index
    %c0_74 = arith.constant 0 : index
    %c0_75 = arith.constant 0 : index
    %59 = vector.load %arg5[%c2_73, %c0_74, %c0_75] : memref<9x4x128xf32, #tpu.memory_space<vmem>>, vector<1x4x128xf32>
    %60 = vector.shape_cast %59 : vector<1x4x128xf32> to vector<4x128xf32>
    %cst_76 = arith.constant dense<0.000000e+00> : vector<128x128xf32>
    %61 = tpu.matmul %58, %60, %cst_76 {dimension_numbers = #tpu.dot_dimension_numbers<[1], [0], [0], [1], [0, 0, 1, 1], [], []>} : vector<128x4xf32>, vector<4x128xf32>, vector<128x128xf32> -> vector<128x128xf32>
    %c0_77 = arith.constant 0 : index
    %c0_78 = arith.constant 0 : index
    %62 = vector.load %arg9[%c0_77, %c0_78] : memref<128x128xf32, #tpu.memory_space<vmem>>, vector<128x128xf32>
    %63 = arith.addf %62, %61 : vector<128x128xf32>
    %c0_79 = arith.constant 0 : index
    %c0_80 = arith.constant 0 : index
    %64 = vector.load %arg9[%c0_79, %c0_80] : memref<128x128xf32, #tpu.memory_space<vmem>>, vector<128x128xf32>
    tpu.vector_store %arg9[%c0_79, %c0_80], %63 {strides = array<i32>} : memref<128x128xf32, #tpu.memory_space<vmem>>, vector<128x128xf32>,
    %65 = vector.extract_strided_slice %57 {offsets = [16, 0], sizes = [128, 4], strides = [1, 1]} : vector<160x4xf32> to vector<128x4xf32>
    %c5 = arith.constant 5 : index
    %c0_81 = arith.constant 0 : index
    %c0_82 = arith.constant 0 : index
    %66 = vector.load %arg5[%c5, %c0_81, %c0_82] : memref<9x4x128xf32, #tpu.memory_space<vmem>>, vector<1x4x128xf32>
    %67 = vector.shape_cast %66 : vector<1x4x128xf32> to vector<4x128xf32>
    %cst_83 = arith.constant dense<0.000000e+00> : vector<128x128xf32>
    %68 = tpu.matmul %65, %67, %cst_83 {dimension_numbers = #tpu.dot_dimension_numbers<[1], [0], [0], [1], [0, 0, 1, 1], [], []>} : vector<128x4xf32>, vector<4x128xf32>, vector<128x128xf32> -> vector<128x128xf32>
    %c0_84 = arith.constant 0 : index
    %c0_85 = arith.constant 0 : index
    %69 = vector.load %arg9[%c0_84, %c0_85] : memref<128x128xf32, #tpu.memory_space<vmem>>, vector<128x128xf32>
    %70 = arith.addf %69, %68 : vector<128x128xf32>
    %c0_86 = arith.constant 0 : index
    %c0_87 = arith.constant 0 : index
    %71 = vector.load %arg9[%c0_86, %c0_87] : memref<128x128xf32, #tpu.memory_space<vmem>>, vector<128x128xf32>
    tpu.vector_store %arg9[%c0_86, %c0_87], %70 {strides = array<i32>} : memref<128x128xf32, #tpu.memory_space<vmem>>, vector<128x128xf32>,
    %72 = vector.extract_strided_slice %57 {offsets = [32, 0], sizes = [128, 4], strides = [1, 1]} : vector<160x4xf32> to vector<128x4xf32>
    %c8 = arith.constant 8 : index
    %c0_88 = arith.constant 0 : index
    %c0_89 = arith.constant 0 : index
    %73 = vector.load %arg5[%c8, %c0_88, %c0_89] : memref<9x4x128xf32, #tpu.memory_space<vmem>>, vector<1x4x128xf32>
    %74 = vector.shape_cast %73 : vector<1x4x128xf32> to vector<4x128xf32>
    %cst_90 = arith.constant dense<0.000000e+00> : vector<128x128xf32>
    %75 = tpu.matmul %72, %74, %cst_90 {dimension_numbers = #tpu.dot_dimension_numbers<[1], [0], [0], [1], [0, 0, 1, 1], [], []>} : vector<128x4xf32>, vector<4x128xf32>, vector<128x128xf32> -> vector<128x128xf32>
    %c0_91 = arith.constant 0 : index
    %c0_92 = arith.constant 0 : index
    %76 = vector.load %arg9[%c0_91, %c0_92] : memref<128x128xf32, #tpu.memory_space<vmem>>, vector<128x128xf32>
    %77 = arith.addf %76, %75 : vector<128x128xf32>
    %c0_93 = arith.constant 0 : index
    %c0_94 = arith.constant 0 : index
    %78 = vector.load %arg9[%c0_93, %c0_94] : memref<128x128xf32, #tpu.memory_space<vmem>>, vector<128x128xf32>
    tpu.vector_store %arg9[%c0_93, %c0_94], %77 {strides = array<i32>} : memref<128x128xf32, #tpu.memory_space<vmem>>, vector<128x128xf32>,
    %c0_95 = arith.constant 0 : index
    %c0_96 = arith.constant 0 : index
    %79 = vector.load %arg9[%c0_95, %c0_96] : memref<128x128xf32, #tpu.memory_space<vmem>>, vector<128x128xf32>
    %c0_97 = arith.constant 0 : index
    %c0_98 = arith.constant 0 : index
    %80 = vector.load %arg6[%c0_97, %c0_98] : memref<1x128xf32, #tpu.memory_space<vmem>>, vector<1x128xf32>
    %81 = vector.broadcast %80 : vector<1x128xf32> to vector<128x128xf32>
    %82 = arith.addf %79, %81 : vector<128x128xf32>
    %cst_99 = arith.constant 0.000000e+00 : f32
    %83 = vector.broadcast %cst_99 : f32 to vector<128x128xf32>
    %84 = arith.maximumf %82, %83 : vector<128x128xf32>
    %85 = vector.shape_cast %84 : vector<128x128xf32> to vector<8x16x128xf32>
    %c0_100 = arith.constant 0 : index
    %c0_101 = arith.constant 0 : index
    %c0_102 = arith.constant 0 : index
    %c0_103 = arith.constant 0 : index
    %86 = vector.load %arg7[%c0_100, %c0_101, %c0_102, %c0_103] : memref<1x8x16x128xf32, #tpu.memory_space<vmem>>, vector<1x8x16x128xf32>
    %87 = vector.shape_cast %86 : vector<1x8x16x128xf32> to vector<8x16x128xf32>
    %88 = vector.shape_cast %85 : vector<8x16x128xf32> to vector<1x8x16x128xf32>
    tpu.vector_store %arg7[%c0_100, %c0_101, %c0_102, %c0_103], %88 {strides = array<i32>} : memref<1x8x16x128xf32, #tpu.memory_space<vmem>>, vector<1x8x16x128xf32>,
    return
  }
  func.func @transform_0(%arg0: i32, %arg1: i32) -> (i32, i32, i32, i32) {
    %c0_i32 = arith.constant 0 : i32
    %c0_i32_0 = arith.constant 0 : i32
    %c0_i32_1 = arith.constant 0 : i32
    return %arg0, %arg1, %c0_i32, %c0_i32_0 : i32, i32, i32, i32
  }
  func.func @transform_1(%arg0: i32, %arg1: i32) -> (i32, i32, i32, i32) {
    %c0_i32 = arith.constant 0 : i32
    %c0_i32_0 = arith.constant 0 : i32
    %c0_i32_1 = arith.constant 0 : i32
    return %arg0, %arg1, %c0_i32, %c0_i32_0 : i32, i32, i32, i32
  }
  func.func @transform_2(%arg0: i32, %arg1: i32) -> (i32, i32, i32, i32) {
    %c0_i32 = arith.constant 0 : i32
    %c0_i32_0 = arith.constant 0 : i32
    %c0_i32_1 = arith.constant 0 : i32
    return %arg0, %arg1, %c0_i32, %c0_i32_0 : i32, i32, i32, i32
  }
  func.func @transform_3(%arg0: i32, %arg1: i32) -> (i32, i32, i32) {
    %c0_i32 = arith.constant 0 : i32
    %c0_i32_0 = arith.constant 0 : i32
    %c0_i32_1 = arith.constant 0 : i32
    %c0_i32_2 = arith.constant 0 : i32
    return %c0_i32, %c0_i32_0, %c0_i32_1 : i32, i32, i32
  }
  func.func @transform_4(%arg0: i32, %arg1: i32) -> (i32, i32) {
    %c0_i32 = arith.constant 0 : i32
    %c0_i32_0 = arith.constant 0 : i32
    %c0_i32_1 = arith.constant 0 : i32
    return %c0_i32, %c0_i32_0 : i32, i32
  }
  func.func @transform_5(%arg0: i32, %arg1: i32) -> (i32, i32, i32, i32) {
    %c0_i32 = arith.constant 0 : i32
    %c0_i32_0 = arith.constant 0 : i32
    %c0_i32_1 = arith.constant 0 : i32
    return %arg0, %arg1, %c0_i32, %c0_i32_0 : i32, i32, i32, i32
  }
}

</mosaic_0001>

<llo_original>
// kernel: tpu_custom_call.1
$region0: #{tpu_custom_call.1}
  #allocation0 [shape = 'u32[]', space=smem, size = 0x4, offset = 0x4, fixed_abs, tag = 'smem constant byte address 0x4 - core index']
  #allocation1 [shape = 'u32[72,128]{1,0:T(1,128)}', space=vmem, size = 0x9000, scoped, tag = 'internal scratch']
  #allocation2 [shape = 'f32[10,18,4]{2,1,0:T(8,128)}', space=vmem, size = 0x1e000, scoped, tag = 'scratch operand']
  #allocation3 [shape = 'f32[128,128]{1,0:T(8,128)}', space=vmem, size = 0x10000, scoped, tag = 'scratch operand']
  %s0 = inlined_call_operand.vmem [shape: f32[2,16,16,4], index: 0, kind: input, shape index: {}]
  %s1 = inlined_call_operand.vmem [shape: f32[2,2,16,4], index: 1, kind: input, shape index: {}]
  %s2 = inlined_call_operand.vmem [shape: f32[2,2,16,4], index: 2, kind: input, shape index: {}]
  %s3 = inlined_call_operand.vmem [shape: f32[9,4,128], index: 3, kind: input, shape index: {}]
  %s4 = inlined_call_operand.vmem [shape: f32[1,128], index: 4, kind: input, shape index: {}]
  %s5 = inlined_call_operand.hbm [shape: f32[2,16,16,128], index: 5, kind: output, shape index: {}]
  %s6 = sld [smem:[#allocation0]]
  $region53: #{tpu_custom_call.1} parent=0
    _
  %s8 = ssub.s32 1, %s6
  %s9 = scalar_select 0, %s8, %s6
  $region1: #{tpu_custom_call.1} parent=0
    #allocation4 [shape = 'u8[131072]{0}', space=vmem, size = 0x20000, scoped, tag = 'output window, operand 0']
    #allocation5 [shape = 's32[2]{0}', space=sflag, size = 0x8, scoped, tag = 'scoped memory for tpu_custom_call.1']
    %10 = vsyncpa [#allocation5], 0
    %s11 = scalar_lea.sflag [#allocation5], 1
    %12 = vsyncpa %s11, 0
    loop: start=0, step=1, limit=6
    $region2: #{tpu_custom_call.1} parent=1 // loop_pre_header
      _
    $region3: #{tpu_custom_call.1} parent=1 // loop_header
      %s14 = sphi 0, %s18
      %p15 = scmp.ge.s32.totalorder %s14, 6
      %s21 = sphi 0, %s33
      %s22 = sphi 0, %s29
      %s23 = sphi 0, %s21
      %s24 = sphi 0, %s22
      %s25 = sphi 0, %s23
      %s26 = sphi 0, %s24
      %s38 = sphi 0, %s40
      %s41 = sphi 0, %s38
      %s42 = sphi 0, %s41
      %s58 = sphi 0, %s42
      %s66 = sphi 0, %s68
      %s69 = sphi 0, %s66
      %s70 = sphi 0, %s69
      %s86 = sphi 0, %s70
      %s94 = sphi 0, %s96
      %s97 = sphi 0, %s94
      %s98 = sphi 0, %s97
      %s114 = sphi 0, %s98
      %s118 = sphi 0, %s118
      %s120 = sphi 0, %s118
      %s121 = sphi 0, %s120
      %s135 = sphi 0, %s121
      %s139 = sphi 0, %s139
      %s141 = sphi 0, %s139
      %s142 = sphi 0, %s141
      %s156 = sphi 0, %s142
      %s164 = sphi 0, %s166
      %s167 = sphi 0, %s164
      %s168 = sphi 0, %s167
      %s184 = sphi 0, %s168
    $region4: #{tpu_custom_call.1} parent=1 // loop_header_branch
      %17 = sbr.rel (%p15) target = $region8
    $region5: #{tpu_custom_call.1} parent=1 // loop_body
      %s19 = ssub.s32 %s14, 1
      %s20 = ssub.s32 %s14, 2
      %s27 = sadd.s32 1, %s22
      %p28 = scmp.ge.s32.totalorder %s27, 2
      %s29 = scalar_select %p28, 0, %s27
      %s30 = sadd.s32 1, %s21
      %s31 = scalar_select %p28, %s30, %s21
      %p32 = scmp.ge.s32.totalorder %s31, 2
      %s33 = scalar_select %p32, 0, %s31
      %s34 = ssub.s32 %s21, %s33
      %s35 = ssub.s32 %s22, %s29
      %s36 = sor.u32 %s34, %s35
      %p37 = scmp.eq.s32.totalorder %s36, 0
      %s39 = sadd.s32 %s38, 1
      %s40 = scalar_select %p37, %s38, %s39
      %p43 = pneg %p37
      %p44 = scmp.eq.s32.totalorder %s14, 3
      %p45 = por %p43, %p44
      %p46 = scmp.ne.s32.totalorder %s38, %s41
      %p47 = scmp.eq.s32.totalorder %s14, 0
      %p48 = por %p46, %p47
      %p49 = scmp.ne.s32.totalorder %s38, %s41
      %p50 = scmp.eq.s32.totalorder %s19, 3
      %p51 = por %p49, %p50
      %p52 = scmp.ne.s32.totalorder %s41, %s42
      %p53 = scmp.eq.s32.totalorder %s19, 0
      %p54 = por %p52, %p53
      %p55 = scmp.ne.s32.totalorder %s41, %s42
      %p56 = scmp.eq.s32.totalorder %s20, 3
      %p57 = por %p55, %p56
      %p59 = scmp.ne.s32.totalorder %s42, %s58
      %p60 = scmp.eq.s32.totalorder %s20, 0
      %p61 = por %p59, %p60
      %s62 = ssub.s32 %s21, %s33
      %s63 = ssub.s32 %s22, %s29
      %s64 = sor.u32 %s62, %s63
      %p65 = scmp.eq.s32.totalorder %s64, 0
      %s67 = sadd.s32 %s66, 1
      %s68 = scalar_select %p65, %s66, %s67
      %p71 = pneg %p65
      %p72 = scmp.eq.s32.totalorder %s14, 3
      %p73 = por %p71, %p72
      %p74 = scmp.ne.s32.totalorder %s66, %s69
      %p75 = scmp.eq.s32.totalorder %s14, 0
      %p76 = por %p74, %p75
      %p77 = scmp.ne.s32.totalorder %s66, %s69
      %p78 = scmp.eq.s32.totalorder %s19, 3
      %p79 = por %p77, %p78
      %p80 = scmp.ne.s32.totalorder %s69, %s70
      %p81 = scmp.eq.s32.totalorder %s19, 0
      %p82 = por %p80, %p81
      %p83 = scmp.ne.s32.totalorder %s69, %s70
      %p84 = scmp.eq.s32.totalorder %s20, 3
      %p85 = por %p83, %p84
      %p87 = scmp.ne.s32.totalorder %s70, %s86
      %p88 = scmp.eq.s32.totalorder %s20, 0
      %p89 = por %p87, %p88
      %s90 = ssub.s32 %s21, %s33
      %s91 = ssub.s32 %s22, %s29
      %s92 = sor.u32 %s90, %s91
      %p93 = scmp.eq.s32.totalorder %s92, 0
      %s95 = sadd.s32 %s94, 1
      %s96 = scalar_select %p93, %s94, %s95
      %p99 = pneg %p93
      %p100 = scmp.eq.s32.totalorder %s14, 3
      %p101 = por %p99, %p100
      %p102 = scmp.ne.s32.totalorder %s94, %s97
      %p103 = scmp.eq.s32.totalorder %s14, 0
      %p104 = por %p102, %p103
      %p105 = scmp.ne.s32.totalorder %s94, %s97
      %p106 = scmp.eq.s32.totalorder %s19, 3
      %p107 = por %p105, %p106
      %p108 = scmp.ne.s32.totalorder %s97, %s98
      %p109 = scmp.eq.s32.totalorder %s19, 0
      %p110 = por %p108, %p109
      %p111 = scmp.ne.s32.totalorder %s97, %s98
      %p112 = scmp.eq.s32.totalorder %s20, 3
      %p113 = por %p111, %p112
      %p115 = scmp.ne.s32.totalorder %s98, %s114
      %p116 = scmp.eq.s32.totalorder %s20, 0
      %p117 = por %p115, %p116
      %s119 = sadd.s32 %s118, 1
      %p122 = scmp.eq.s32.totalorder %s14, 3
      %p123 = scmp.ne.s32.totalorder %s118, %s120
      %p124 = scmp.eq.s32.totalorder %s14, 0
      %p125 = por %p123, %p124
      %p126 = scmp.ne.s32.totalorder %s118, %s120
      %p127 = scmp.eq.s32.totalorder %s19, 3
      %p128 = por %p126, %p127
      %p129 = scmp.ne.s32.totalorder %s120, %s121
      %p130 = scmp.eq.s32.totalorder %s19, 0
      %p131 = por %p129, %p130
      %p132 = scmp.ne.s32.totalorder %s120, %s121
      %p133 = scmp.eq.s32.totalorder %s20, 3
      %p134 = por %p132, %p133
      %p136 = scmp.ne.s32.totalorder %s121, %s135
      %p137 = scmp.eq.s32.totalorder %s20, 0
      %p138 = por %p136, %p137
      %s140 = sadd.s32 %s139, 1
      %p143 = scmp.eq.s32.totalorder %s14, 3
      %p144 = scmp.ne.s32.totalorder %s139, %s141
      %p145 = scmp.eq.s32.totalorder %s14, 0
      %p146 = por %p144, %p145
      %p147 = scmp.ne.s32.totalorder %s139, %s141
      %p148 = scmp.eq.s32.totalorder %s19, 3
      %p149 = por %p147, %p148
      %p150 = scmp.ne.s32.totalorder %s141, %s142
      %p151 = scmp.eq.s32.totalorder %s19, 0
      %p152 = por %p150, %p151
      %p153 = scmp.ne.s32.totalorder %s141, %s142
      %p154 = scmp.eq.s32.totalorder %s20, 3
      %p155 = por %p153, %p154
      %p157 = scmp.ne.s32.totalorder %s142, %s156
      %p158 = scmp.eq.s32.totalorder %s20, 0
      %p159 = por %p157, %p158
      %s160 = ssub.s32 %s21, %s33
      %s161 = ssub.s32 %s22, %s29
      %s162 = sor.u32 %s160, %s161
      %p163 = scmp.eq.s32.totalorder %s162, 0
      %s165 = sadd.s32 %s164, 1
      %s166 = scalar_select %p163, %s164, %s165
      %p169 = pneg %p163
      %p170 = scmp.eq.s32.totalorder %s14, 3
      %p171 = por %p169, %p170
      %p172 = scmp.ne.s32.totalorder %s164, %s167
      %p173 = scmp.eq.s32.totalorder %s14, 0
      %p174 = por %p172, %p173
      %p175 = scmp.ne.s32.totalorder %s164, %s167
      %p176 = scmp.eq.s32.totalorder %s19, 3
      %p177 = por %p175, %p176
      %p178 = scmp.ne.s32.totalorder %s167, %s168
      %p179 = scmp.eq.s32.totalorder %s19, 0
      %p180 = por %p178, %p179
      %p181 = scmp.ne.s32.totalorder %s167, %s168
      %p182 = scmp.eq.s32.totalorder %s20, 3
      %p183 = por %p181, %p182
      %p185 = scmp.ne.s32.totalorder %s168, %s184
      %p186 = scmp.eq.s32.totalorder %s20, 0
      %p187 = por %p185, %p186
      %p188 = scmp.le.s32.totalorder 1, %s14
      %p189 = scmp.lt.s32.totalorder %s14, 5
      %p190 = pnand %p188, %p189
      %p191 = pneg %p190
      // Predicated region
      $region9: #{tpu_custom_call.1} parent=5 // pred_check
        _
      $region10: #{tpu_custom_call.1} parent=5 // pred_check_branch
        %193 = sbr.rel (%p190) target = $region12
      $region11: #{tpu_custom_call.1} parent=5 // pred_region
        %s194 = ssub.s32 %s14, 1
        // Predicated region
        $region13: #{tpu_custom_call.1} parent=11 // pred_check
          %p195 = pneg %p131
        $region14: #{tpu_custom_call.1} parent=11 // pred_check_branch
          %197 = sbr.rel (%p195) target = $region16
        $region15: #{tpu_custom_call.1} parent=11 // pred_region
          _
        $region16: #{tpu_custom_call.1} parent=11 // pred_fallthru
          _
        // Predicated region
        $region17: #{tpu_custom_call.1} parent=11 // pred_check
          %p198 = pneg %p152
        $region18: #{tpu_custom_call.1} parent=11 // pred_check_branch
          %200 = sbr.rel (%p198) target = $region20
        $region19: #{tpu_custom_call.1} parent=11 // pred_region
          _
        $region20: #{tpu_custom_call.1} parent=11 // pred_fallthru
          _
      $region12: #{tpu_custom_call.1} parent=5 // pred_fallthru
        _
      %p201 = scmp.lt.s32.totalorder %s14, 4
      // Predicated region
      $region21: #{tpu_custom_call.1} parent=5 // pred_check
        %p202 = pneg %p201
      $region22: #{tpu_custom_call.1} parent=5 // pred_check_branch
        %204 = sbr.rel (%p202) target = $region24
      $region23: #{tpu_custom_call.1} parent=5 // pred_region
        // Predicated region
        $region25: #{tpu_custom_call.1} parent=23 // pred_check
          %p205 = pneg %p48
        $region26: #{tpu_custom_call.1} parent=23 // pred_check_branch
          %207 = sbr.rel (%p205) target = $region28
        $region27: #{tpu_custom_call.1} parent=23 // pred_region
          %s208 = smul.u32 8, %s22
          %p209 = scmp.lt.s32.totalorder %s21, 1
          %s210 = scalar_select %p209, %s21, 1
          %p211 = scmp.lt.s32.totalorder %s208, 15
          %s212 = scalar_select %p211, %s208, 15
          %s213 = smul.addr %s212, 2
          %s214 = smul.addr %s210, 32
          %s215 = sadd.s32 %s213, %s214
          %s216 = smul.addr %s215, 8
          %s217 = scalar_lea.vmem %s0, %s216
          %s218 = smul.u32 8, %s22
        $region28: #{tpu_custom_call.1} parent=23 // pred_fallthru
          _
        // Predicated region
        $region29: #{tpu_custom_call.1} parent=23 // pred_check
          %p219 = pneg %p76
        $region30: #{tpu_custom_call.1} parent=23 // pred_check_branch
          %221 = sbr.rel (%p219) target = $region32
        $region31: #{tpu_custom_call.1} parent=23 // pred_region
          %p222 = scmp.lt.s32.totalorder %s21, 1
          %s223 = scalar_select %p222, %s21, 1
          %p224 = scmp.lt.s32.totalorder %s22, 1
          %s225 = scalar_select %p224, %s22, 1
          %s226 = smul.addr %s225, 2
          %s227 = smul.addr %s223, 4
          %s228 = sadd.s32 %s226, %s227
          %s229 = smul.addr %s228, 8
          %s230 = scalar_lea.vmem %s1, %s229
        $region32: #{tpu_custom_call.1} parent=23 // pred_fallthru
          _
        // Predicated region
        $region33: #{tpu_custom_call.1} parent=23 // pred_check
          %p231 = pneg %p104
        $region34: #{tpu_custom_call.1} parent=23 // pred_check_branch
          %233 = sbr.rel (%p231) target = $region36
        $region35: #{tpu_custom_call.1} parent=23 // pred_region
          %p234 = scmp.lt.s32.totalorder %s21, 1
          %s235 = scalar_select %p234, %s21, 1
          %p236 = scmp.lt.s32.totalorder %s22, 1
          %s237 = scalar_select %p236, %s22, 1
          %s238 = smul.addr %s237, 2
          %s239 = smul.addr %s235, 4
          %s240 = sadd.s32 %s238, %s239
          %s241 = smul.addr %s240, 8
          %s242 = scalar_lea.vmem %s2, %s241
        $region36: #{tpu_custom_call.1} parent=23 // pred_fallthru
          _
      $region24: #{tpu_custom_call.1} parent=5 // pred_fallthru
        _
      %p243 = scmp.le.s32.totalorder 1, %s14
      %p244 = scmp.lt.s32.totalorder %s14, 5
      %p245 = pnand %p243, %p244
      %p246 = pneg %p245
      // Predicated region
      $region37: #{tpu_custom_call.1} parent=5 // pred_check
        _
      $region38: #{tpu_custom_call.1} parent=5 // pred_check_branch
        %248 = sbr.rel (%p245) target = $region40
      $region39: #{tpu_custom_call.1} parent=5 // pred_region
        %s249 = ssub.s32 %s14, 1
        %s250 = smul.u32 8, %s24
        %p251 = scmp.lt.s32.totalorder %s23, 1
        %s252 = scalar_select %p251, %s23, 1
        %p253 = scmp.lt.s32.totalorder %s250, 15
        %s254 = scalar_select %p253, %s250, 15
        %s255 = smul.addr %s254, 2
        %s256 = smul.addr %s252, 32
        %s257 = sadd.s32 %s255, %s256
        %s258 = smul.addr %s257, 8
        %s259 = scalar_lea.vmem %s0, %s258
        %p260 = pneg %p54
        %p261 = pneg %p51
        %p262 = scmp.lt.s32.totalorder %s23, 1
        %s263 = scalar_select %p262, %s23, 1
        %p264 = scmp.lt.s32.totalorder %s24, 1
        %s265 = scalar_select %p264, %s24, 1
        %s266 = smul.addr %s265, 2
        %s267 = smul.addr %s263, 4
        %s268 = sadd.s32 %s266, %s267
        %s269 = smul.addr %s268, 8
        %s270 = scalar_lea.vmem %s1, %s269
        %p271 = pneg %p82
        %p272 = pneg %p79
        %p273 = scmp.lt.s32.totalorder %s23, 1
        %s274 = scalar_select %p273, %s23, 1
        %p275 = scmp.lt.s32.totalorder %s24, 1
        %s276 = scalar_select %p275, %s24, 1
        %s277 = smul.addr %s276, 2
        %s278 = smul.addr %s274, 4
        %s279 = sadd.s32 %s277, %s278
        %s280 = smul.addr %s279, 8
        %s281 = scalar_lea.vmem %s2, %s280
        %p282 = pneg %p110
        %p283 = pneg %p107
        %p284 = pneg %p131
        %p285 = pneg %p128
        %p286 = pneg %p152
        %p287 = pneg %p149
        %p288 = pneg %p180
        %p289 = pneg %p177
        %s290 = sand.u32 %s167, 1
        %s291 = scalar_lea.sflag [#allocation5], %s290
        %s292 = sand.u32 %s167, 1
        %s293 = smul.addr %s292, 128
        %s294 = scalar_lea.vmem [#allocation4], %s293
        %s295 = smul.u32 8, %s24
        %p296 = scmp.lt.s32.totalorder %s23, 1
        %s297 = scalar_select %p296, %s23, 1
        %p298 = scmp.lt.s32.totalorder %s295, 15
        %s299 = scalar_select %p298, %s295, 15
        %s300 = smul.addr %s299, 2
        %s301 = smul.addr %s297, 32
        %s302 = sadd.s32 %s300, %s301
        %s303 = smul.addr %s302, 8
        %s304 = scalar_lea.vmem %s0, %s303
        %s305 = smul.u32 8, %s24
        %p306 = scmp.lt.s32.totalorder %s23, 1
        %s307 = scalar_select %p306, %s23, 1
        %p308 = scmp.lt.s32.totalorder %s24, 1
        %s309 = scalar_select %p308, %s24, 1
        %s310 = smul.addr %s309, 2
        %s311 = smul.addr %s307, 4
        %s312 = sadd.s32 %s310, %s311
        %s313 = smul.addr %s312, 8
        %s314 = scalar_lea.vmem %s1, %s313
        %p315 = scmp.lt.s32.totalorder %s23, 1
        %s316 = scalar_select %p315, %s23, 1
        %p317 = scmp.lt.s32.totalorder %s24, 1
        %s318 = scalar_select %p317, %s24, 1
        %s319 = smul.addr %s318, 2
        %s320 = smul.addr %s316, 4
        %s321 = sadd.s32 %s319, %s320
        %s322 = smul.addr %s321, 8
        %s323 = scalar_lea.vmem %s2, %s322
        %s324 = smul.u32 8, %s24
        %vm325 = vcmask 24576
        %326 = vst.msk [vmem:[#allocation2] sm:$0x1] %vm325, 0.0
        %327 = vst.msk [vmem:[#allocation2 + $0x18] sm:$0x1] %vm325, 0.0
        %328 = vst.msk [vmem:[#allocation2 + $0x30] sm:$0x1] %vm325, 0.0
        %329 = vst.msk [vmem:[#allocation2 + $0x48] sm:$0x1] %vm325, 0.0
        %330 = vst.msk [vmem:[#allocation2 + $0x60] sm:$0x1] %vm325, 0.0
        %331 = vst.msk [vmem:[#allocation2 + $0x78] sm:$0x1] %vm325, 0.0
        %332 = vst.msk [vmem:[#allocation2 + $0x90] sm:$0x1] %vm325, 0.0
        %333 = vst.msk [vmem:[#allocation2 + $0xa8] sm:$0x1] %vm325, 0.0
        %334 = vst.msk [vmem:[#allocation2 + $0xc0] sm:$0x1] %vm325, 0.0
        %335 = vst.msk [vmem:[#allocation2 + $0xd8] sm:$0x1] %vm325, 0.0
        %336 = vst.msk [vmem:[#allocation2 + $0x11] sm:$0x1] %vm325, 0.0
        %337 = vst.msk [vmem:[#allocation2 + $0x29] sm:$0x1] %vm325, 0.0
        %338 = vst.msk [vmem:[#allocation2 + $0x41] sm:$0x1] %vm325, 0.0
        %339 = vst.msk [vmem:[#allocation2 + $0x59] sm:$0x1] %vm325, 0.0
        %340 = vst.msk [vmem:[#allocation2 + $0x71] sm:$0x1] %vm325, 0.0
        %341 = vst.msk [vmem:[#allocation2 + $0x89] sm:$0x1] %vm325, 0.0
        %342 = vst.msk [vmem:[#allocation2 + $0xa1] sm:$0x1] %vm325, 0.0
        %343 = vst.msk [vmem:[#allocation2 + $0xb9] sm:$0x1] %vm325, 0.0
        %344 = vst.msk [vmem:[#allocation2 + $0xd1] sm:$0x1] %vm325, 0.0
        %345 = vst.msk [vmem:[#allocation2 + $0xe9] sm:$0x1] %vm325, 0.0
        %v346 = vld [vmem:[%s314] sm:$0xff]
        %v347 = vld [vmem:[%s314 + $0x8] sm:$0xff]
        %vm348 = vcmask 31744
        %349 = vst.msk [vmem:[#allocation2 + $0x1] sm:$0xff] %vm348, %v346
        %350 = vst.msk [vmem:[#allocation2 + $0x9] sm:$0xff] %vm348, %v347
        %v351 = vld [vmem:[%s304] sm:$0xff]
        %v352 = vld [vmem:[%s304 + $0x8] sm:$0xff]
        %v353 = vld [vmem:[%s304 + $0x10] sm:$0xff]
        %v354 = vld [vmem:[%s304 + $0x18] sm:$0xff]
        %v355 = vld [vmem:[%s304 + $0x20] sm:$0xff]
        %v356 = vld [vmem:[%s304 + $0x28] sm:$0xff]
        %v357 = vld [vmem:[%s304 + $0x30] sm:$0xff]
        %v358 = vld [vmem:[%s304 + $0x38] sm:$0xff]
        %v359 = vld [vmem:[%s304 + $0x40] sm:$0xff]
        %v360 = vld [vmem:[%s304 + $0x48] sm:$0xff]
        %v361 = vld [vmem:[%s304 + $0x50] sm:$0xff]
        %v362 = vld [vmem:[%s304 + $0x58] sm:$0xff]
        %v363 = vld [vmem:[%s304 + $0x60] sm:$0xff]
        %v364 = vld [vmem:[%s304 + $0x68] sm:$0xff]
        %v365 = vld [vmem:[%s304 + $0x70] sm:$0xff]
        %v366 = vld [vmem:[%s304 + $0x78] sm:$0xff]
        %s367 = scalar_lea.vmem [#allocation2], 24
        %368 = vst.msk [vmem:[%s367 + $0x1] sm:$0xff] %vm348, %v351
        %369 = vst.msk [vmem:[%s367 + $0x9] sm:$0xff] %vm348, %v352
        %370 = vst.msk [vmem:[%s367 + $0x19] sm:$0xff] %vm348, %v353
        %371 = vst.msk [vmem:[%s367 + $0x21] sm:$0xff] %vm348, %v354
        %372 = vst.msk [vmem:[%s367 + $0x31] sm:$0xff] %vm348, %v355
        %373 = vst.msk [vmem:[%s367 + $0x39] sm:$0xff] %vm348, %v356
        %374 = vst.msk [vmem:[%s367 + $0x49] sm:$0xff] %vm348, %v357
        %375 = vst.msk [vmem:[%s367 + $0x51] sm:$0xff] %vm348, %v358
        %376 = vst.msk [vmem:[%s367 + $0x61] sm:$0xff] %vm348, %v359
        %377 = vst.msk [vmem:[%s367 + $0x69] sm:$0xff] %vm348, %v360
        %378 = vst.msk [vmem:[%s367 + $0x79] sm:$0xff] %vm348, %v361
        %379 = vst.msk [vmem:[%s367 + $0x81] sm:$0xff] %vm348, %v362
        %380 = vst.msk [vmem:[%s367 + $0x91] sm:$0xff] %vm348, %v363
        %381 = vst.msk [vmem:[%s367 + $0x99] sm:$0xff] %vm348, %v364
        %382 = vst.msk [vmem:[%s367 + $0xa9] sm:$0xff] %vm348, %v365
        %383 = vst.msk [vmem:[%s367 + $0xb1] sm:$0xff] %vm348, %v366
        %v384 = vld [vmem:[%s323] sm:$0xff]
        %v385 = vld [vmem:[%s323 + $0x8] sm:$0xff]
        %s386 = scalar_lea.vmem [#allocation2], 216
        %387 = vst.msk [vmem:[%s386 + $0x1] sm:$0xff] %vm348, %v384
        %388 = vst.msk [vmem:[%s386 + $0x9] sm:$0xff] %vm348, %v385
        %v389 = vld [vmem:[#allocation2] sm:$0xff]
        %v390 = vld [vmem:[#allocation2 + $0x8] sm:$0xff]
        %v391 = vld [vmem:[#allocation2 + $0x18] sm:$0xff]
        %v392 = vld [vmem:[#allocation2 + $0x20] sm:$0xff]
        %v393 = vld [vmem:[#allocation2 + $0x30] sm:$0xff]
        %v394 = vld [vmem:[#allocation2 + $0x38] sm:$0xff]
        %v395 = vld [vmem:[#allocation2 + $0x48] sm:$0xff]
        %v396 = vld [vmem:[#allocation2 + $0x50] sm:$0xff]
        %v397 = vld [vmem:[#allocation2 + $0x60] sm:$0xff]
        %v398 = vld [vmem:[#allocation2 + $0x68] sm:$0xff]
        %v399 = vld [vmem:[#allocation2 + $0x78] sm:$0xff]
        %v400 = vld [vmem:[#allocation2 + $0x80] sm:$0xff]
        %v401 = vld [vmem:[#allocation2 + $0x90] sm:$0xff]
        %v402 = vld [vmem:[#allocation2 + $0x98] sm:$0xff]
        %v403 = vld [vmem:[#allocation2 + $0xa8] sm:$0xff]
        %v404 = vld [vmem:[#allocation2 + $0xb0] sm:$0xff]
        %v405 = vld [vmem:[#allocation2 + $0xc0] sm:$0xff]
        %v406 = vld [vmem:[#allocation2 + $0xc8] sm:$0xff]
        %v407 = vld [vmem:[#allocation2 + $0xd8] sm:$0xff]
        %v408 = vld [vmem:[#allocation2 + $0xe0] sm:$0xff]
        %v409 = vld [vmem:[%s3] sm:$0xf]
        %v411 = vsel %vm348, %v389, 0
        %v414 = vsel %vm348, %v390, 0
        %v417 = vsel %vm348, %v391, 0
        %v420 = vsel %vm348, %v392, 0
        %v423 = vsel %vm348, %v393, 0
        %v426 = vsel %vm348, %v394, 0
        %v429 = vsel %vm348, %v395, 0
        %v432 = vsel %vm348, %v396, 0
        %v435 = vsel %vm348, %v397, 0
        %v438 = vsel %vm348, %v398, 0
        %v441 = vsel %vm348, %v399, 0
        %v444 = vsel %vm348, %v400, 0
        %v447 = vsel %vm348, %v401, 0
        %v450 = vsel %vm348, %v402, 0
        %v453 = vsel %vm348, %v403, 0
        %v456 = vsel %vm348, %v404, 0
        %vm458 = vcmask 1043456
        %v460 = vsel %vm458, %v409, 0
        %462 = vmatpush.msra.mxu0 0.0
        %463 = vmatpush.msra.mxu0 0.0
        %464 = vmatpush.msra.mxu0 0.0
        %465 = vmatpush.msra.mxu0 0.0
        %466 = vmatpush.msra.mxu0 0.0
        %467 = vmatpush.msra.mxu0 0.0
        %468 = vmatpush.msra.mxu0 0.0
        %469 = vmatpush.msra.mxu0 0.0
        %470 = vmatpush.msra.mxu0 0.0
        %471 = vmatpush.msra.mxu0 0.0
        %472 = vmatpush.msra.mxu0 0.0
        %473 = vmatpush.msra.mxu0 0.0
        %474 = vmatpush.msra.mxu0 0.0
        %475 = vmatpush.msra.mxu0 0.0
        %476 = vmatpush.msra.mxu0 0.0
        %477 = vmatpush.msra.mxu0 %v460
        %478 = vmatmul.f32.gmra.mxu0 %v411
        %v479 = vpop.f32.mrf.mxu0
        %v480 = vadd.f32 0.0, %v479
        %481 = vmatmul.f32.gmra.mxu0 %v414
        %v482 = vpop.f32.mrf.mxu0
        %v483 = vadd.f32 0.0, %v482
        %484 = vmatmul.f32.gmra.mxu0 %v417
        %v485 = vpop.f32.mrf.mxu0
        %v486 = vadd.f32 0.0, %v485
        %487 = vmatmul.f32.gmra.mxu0 %v420
        %v488 = vpop.f32.mrf.mxu0
        %v489 = vadd.f32 0.0, %v488
        %490 = vmatmul.f32.gmra.mxu0 %v423
        %v491 = vpop.f32.mrf.mxu0
        %v492 = vadd.f32 0.0, %v491
        %493 = vmatmul.f32.gmra.mxu0 %v426
        %v494 = vpop.f32.mrf.mxu0
        %v495 = vadd.f32 0.0, %v494
        %496 = vmatmul.f32.gmra.mxu0 %v429
        %v497 = vpop.f32.mrf.mxu0
        %v498 = vadd.f32 0.0, %v497
        %499 = vmatmul.f32.gmra.mxu0 %v432
        %v500 = vpop.f32.mrf.mxu0
        %v501 = vadd.f32 0.0, %v500
        %502 = vmatmul.f32.gmra.mxu0 %v435
        %v503 = vpop.f32.mrf.mxu0
        %v504 = vadd.f32 0.0, %v503
        %505 = vmatmul.f32.gmra.mxu0 %v438
        %v506 = vpop.f32.mrf.mxu0
        %v507 = vadd.f32 0.0, %v506
        %508 = vmatmul.f32.gmra.mxu0 %v441
        %v509 = vpop.f32.mrf.mxu0
        %v510 = vadd.f32 0.0, %v509
        %511 = vmatmul.f32.gmra.mxu0 %v444
        %v512 = vpop.f32.mrf.mxu0
        %v513 = vadd.f32 0.0, %v512
        %514 = vmatmul.f32.gmra.mxu0 %v447
        %v515 = vpop.f32.mrf.mxu0
        %v516 = vadd.f32 0.0, %v515
        %517 = vmatmul.f32.gmra.mxu0 %v450
        %v518 = vpop.f32.mrf.mxu0
        %v519 = vadd.f32 0.0, %v518
        %520 = vmatmul.f32.gmra.mxu0 %v453
        %v521 = vpop.f32.mrf.mxu0
        %v522 = vadd.f32 0.0, %v521
        %523 = vmatmul.f32.gmra.mxu0 %v456
        %v524 = vpop.f32.mrf.mxu0
        %v525 = vadd.f32 0.0, %v524
        %526 = vdwg.mxu0
        %527 = vst [vmem:[#allocation3] sm:$0xff] %v480
        %528 = vst [vmem:[#allocation3 + $0x8] sm:$0xff] %v483
        %529 = vst [vmem:[#allocation3 + $0x10] sm:$0xff] %v486
        %530 = vst [vmem:[#allocation3 + $0x18] sm:$0xff] %v489
        %531 = vst [vmem:[#allocation3 + $0x20] sm:$0xff] %v492
        %532 = vst [vmem:[#allocation3 + $0x28] sm:$0xff] %v495
        %533 = vst [vmem:[#allocation3 + $0x30] sm:$0xff] %v498
        %534 = vst [vmem:[#allocation3 + $0x38] sm:$0xff] %v501
        %535 = vst [vmem:[#allocation3 + $0x40] sm:$0xff] %v504
        %536 = vst [vmem:[#allocation3 + $0x48] sm:$0xff] %v507
        %537 = vst [vmem:[#allocation3 + $0x50] sm:$0xff] %v510
        %538 = vst [vmem:[#allocation3 + $0x58] sm:$0xff] %v513
        %539 = vst [vmem:[#allocation3 + $0x60] sm:$0xff] %v516
        %540 = vst [vmem:[#allocation3 + $0x68] sm:$0xff] %v519
        %541 = vst [vmem:[#allocation3 + $0x70] sm:$0xff] %v522
        %542 = vst [vmem:[#allocation3 + $0x78] sm:$0xff] %v525
        %s543 = scalar_lea.vmem %s3, 12
        %v544 = vld [vmem:[%s543] sm:$0xf]
        %v546 = vsel %vm348, %v405, 0
        %v549 = vsel %vm348, %v406, 0
        %v552 = vsel %vm458, %v544, 0
        %554 = vmatpush.msra.mxu0 0.0
        %555 = vmatpush.msra.mxu0 0.0
        %556 = vmatpush.msra.mxu0 0.0
        %557 = vmatpush.msra.mxu0 0.0
        %558 = vmatpush.msra.mxu0 0.0
        %559 = vmatpush.msra.mxu0 0.0
        %560 = vmatpush.msra.mxu0 0.0
        %561 = vmatpush.msra.mxu0 0.0
        %562 = vmatpush.msra.mxu0 0.0
        %563 = vmatpush.msra.mxu0 0.0
        %564 = vmatpush.msra.mxu0 0.0
        %565 = vmatpush.msra.mxu0 0.0
        %566 = vmatpush.msra.mxu0 0.0
        %567 = vmatpush.msra.mxu0 0.0
        %568 = vmatpush.msra.mxu0 0.0
        %569 = vmatpush.msra.mxu0 %v552
        %570 = vmatmul.f32.gmra.mxu0 %v417
        %v571 = vpop.f32.mrf.mxu0
        %v572 = vadd.f32 0.0, %v571
        %573 = vmatmul.f32.gmra.mxu0 %v420
        %v574 = vpop.f32.mrf.mxu0
        %v575 = vadd.f32 0.0, %v574
        %576 = vmatmul.f32.gmra.mxu0 %v423
        %v577 = vpop.f32.mrf.mxu0
        %v578 = vadd.f32 0.0, %v577
        %579 = vmatmul.f32.gmra.mxu0 %v426
        %v580 = vpop.f32.mrf.mxu0
        %v581 = vadd.f32 0.0, %v580
        %582 = vmatmul.f32.gmra.mxu0 %v429
        %v583 = vpop.f32.mrf.mxu0
        %v584 = vadd.f32 0.0, %v583
        %585 = vmatmul.f32.gmra.mxu0 %v432
        %v586 = vpop.f32.mrf.mxu0
        %v587 = vadd.f32 0.0, %v586
        %588 = vmatmul.f32.gmra.mxu0 %v435
        %v589 = vpop.f32.mrf.mxu0
        %v590 = vadd.f32 0.0, %v589
        %591 = vmatmul.f32.gmra.mxu0 %v438
        %v592 = vpop.f32.mrf.mxu0
        %v593 = vadd.f32 0.0, %v592
        %594 = vmatmul.f32.gmra.mxu0 %v441
        %v595 = vpop.f32.mrf.mxu0
        %v596 = vadd.f32 0.0, %v595
        %597 = vmatmul.f32.gmra.mxu0 %v444
        %v598 = vpop.f32.mrf.mxu0
        %v599 = vadd.f32 0.0, %v598
        %600 = vmatmul.f32.gmra.mxu0 %v447
        %v601 = vpop.f32.mrf.mxu0
        %v602 = vadd.f32 0.0, %v601
        %603 = vmatmul.f32.gmra.mxu0 %v450
        %v604 = vpop.f32.mrf.mxu0
        %v605 = vadd.f32 0.0, %v604
        %606 = vmatmul.f32.gmra.mxu0 %v453
        %v607 = vpop.f32.mrf.mxu0
        %v608 = vadd.f32 0.0, %v607
        %609 = vmatmul.f32.gmra.mxu0 %v456
        %v610 = vpop.f32.mrf.mxu0
        %v611 = vadd.f32 0.0, %v610
        %612 = vmatmul.f32.gmra.mxu0 %v546
        %v613 = vpop.f32.mrf.mxu0
        %v614 = vadd.f32 0.0, %v613
        %615 = vmatmul.f32.gmra.mxu0 %v549
        %v616 = vpop.f32.mrf.mxu0
        %v617 = vadd.f32 0.0, %v616
        %618 = vdwg.mxu0
        %v619 = vld [vmem:[#allocation3] sm:$0xff]
        %v620 = vld [vmem:[#allocation3 + $0x8] sm:$0xff]
        %v621 = vld [vmem:[#allocation3 + $0x10] sm:$0xff]
        %v622 = vld [vmem:[#allocation3 + $0x18] sm:$0xff]
        %v623 = vld [vmem:[#allocation3 + $0x20] sm:$0xff]
        %v624 = vld [vmem:[#allocation3 + $0x28] sm:$0xff]
        %v625 = vld [vmem:[#allocation3 + $0x30] sm:$0xff]
        %v626 = vld [vmem:[#allocation3 + $0x38] sm:$0xff]
        %v627 = vld [vmem:[#allocation3 + $0x40] sm:$0xff]
        %v628 = vld [vmem:[#allocation3 + $0x48] sm:$0xff]
        %v629 = vld [vmem:[#allocation3 + $0x50] sm:$0xff]
        %v630 = vld [vmem:[#allocation3 + $0x58] sm:$0xff]
        %v631 = vld [vmem:[#allocation3 + $0x60] sm:$0xff]
        %v632 = vld [vmem:[#allocation3 + $0x68] sm:$0xff]
        %v633 = vld [vmem:[#allocation3 + $0x70] sm:$0xff]
        %v634 = vld [vmem:[#allocation3 + $0x78] sm:$0xff]
        %v635 = vadd.f32 %v619, %v572
        %v636 = vadd.f32 %v620, %v575
        %v637 = vadd.f32 %v621, %v578
        %v638 = vadd.f32 %v622, %v581
        %v639 = vadd.f32 %v623, %v584
        %v640 = vadd.f32 %v624, %v587
        %v641 = vadd.f32 %v625, %v590
        %v642 = vadd.f32 %v626, %v593
        %v643 = vadd.f32 %v627, %v596
        %v644 = vadd.f32 %v628, %v599
        %v645 = vadd.f32 %v629, %v602
        %v646 = vadd.f32 %v630, %v605
        %v647 = vadd.f32 %v631, %v608
        %v648 = vadd.f32 %v632, %v611
        %v649 = vadd.f32 %v633, %v614
        %v650 = vadd.f32 %v634, %v617
        %651 = vst [vmem:[#allocation3] sm:$0xff] %v635
        %652 = vst [vmem:[#allocation3 + $0x8] sm:$0xff] %v636
        %653 = vst [vmem:[#allocation3 + $0x10] sm:$0xff] %v637
        %654 = vst [vmem:[#allocation3 + $0x18] sm:$0xff] %v638
        %655 = vst [vmem:[#allocation3 + $0x20] sm:$0xff] %v639
        %656 = vst [vmem:[#allocation3 + $0x28] sm:$0xff] %v640
        %657 = vst [vmem:[#allocation3 + $0x30] sm:$0xff] %v641
        %658 = vst [vmem:[#allocation3 + $0x38] sm:$0xff] %v642
        %659 = vst [vmem:[#allocation3 + $0x40] sm:$0xff] %v643
        %660 = vst [vmem:[#allocation3 + $0x48] sm:$0xff] %v644
        %661 = vst [vmem:[#allocation3 + $0x50] sm:$0xff] %v645
        %662 = vst [vmem:[#allocation3 + $0x58] sm:$0xff] %v646
        %663 = vst [vmem:[#allocation3 + $0x60] sm:$0xff] %v647
        %664 = vst [vmem:[#allocation3 + $0x68] sm:$0xff] %v648
        %665 = vst [vmem:[#allocation3 + $0x70] sm:$0xff] %v649
        %666 = vst [vmem:[#allocation3 + $0x78] sm:$0xff] %v650
        %s667 = scalar_lea.vmem %s3, 24
        %v668 = vld [vmem:[%s667] sm:$0xf]
        %v670 = vsel %vm348, %v407, 0
        %v673 = vsel %vm348, %v408, 0
        %v676 = vsel %vm458, %v668, 0
        %678 = vmatpush.msra.mxu0 0.0
        %679 = vmatpush.msra.mxu0 0.0
        %680 = vmatpush.msra.mxu0 0.0
        %681 = vmatpush.msra.mxu0 0.0
        %682 = vmatpush.msra.mxu0 0.0
        %683 = vmatpush.msra.mxu0 0.0
        %684 = vmatpush.msra.mxu0 0.0
        %685 = vmatpush.msra.mxu0 0.0
        %686 = vmatpush.msra.mxu0 0.0
        %687 = vmatpush.msra.mxu0 0.0
        %688 = vmatpush.msra.mxu0 0.0
        %689 = vmatpush.msra.mxu0 0.0
        %690 = vmatpush.msra.mxu0 0.0
        %691 = vmatpush.msra.mxu0 0.0
        %692 = vmatpush.msra.mxu0 0.0
        %693 = vmatpush.msra.mxu0 %v676
        %694 = vmatmul.f32.gmra.mxu0 %v423
        %v695 = vpop.f32.mrf.mxu0
        %v696 = vadd.f32 0.0, %v695
        %697 = vmatmul.f32.gmra.mxu0 %v426
        %v698 = vpop.f32.mrf.mxu0
        %v699 = vadd.f32 0.0, %v698
        %700 = vmatmul.f32.gmra.mxu0 %v429
        %v701 = vpop.f32.mrf.mxu0
        %v702 = vadd.f32 0.0, %v701
        %703 = vmatmul.f32.gmra.mxu0 %v432
        %v704 = vpop.f32.mrf.mxu0
        %v705 = vadd.f32 0.0, %v704
        %706 = vmatmul.f32.gmra.mxu0 %v435
        %v707 = vpop.f32.mrf.mxu0
        %v708 = vadd.f32 0.0, %v707
        %709 = vmatmul.f32.gmra.mxu0 %v438
        %v710 = vpop.f32.mrf.mxu0
        %v711 = vadd.f32 0.0, %v710
        %712 = vmatmul.f32.gmra.mxu0 %v441
        %v713 = vpop.f32.mrf.mxu0
        %v714 = vadd.f32 0.0, %v713
        %715 = vmatmul.f32.gmra.mxu0 %v444
        %v716 = vpop.f32.mrf.mxu0
        %v717 = vadd.f32 0.0, %v716
        %718 = vmatmul.f32.gmra.mxu0 %v447
        %v719 = vpop.f32.mrf.mxu0
        %v720 = vadd.f32 0.0, %v719
        %721 = vmatmul.f32.gmra.mxu0 %v450
        %v722 = vpop.f32.mrf.mxu0
        %v723 = vadd.f32 0.0, %v722
        %724 = vmatmul.f32.gmra.mxu0 %v453
        %v725 = vpop.f32.mrf.mxu0
        %v726 = vadd.f32 0.0, %v725
        %727 = vmatmul.f32.gmra.mxu0 %v456
        %v728 = vpop.f32.mrf.mxu0
        %v729 = vadd.f32 0.0, %v728
        %730 = vmatmul.f32.gmra.mxu0 %v546
        %v731 = vpop.f32.mrf.mxu0
        %v732 = vadd.f32 0.0, %v731
        %733 = vmatmul.f32.gmra.mxu0 %v549
        %v734 = vpop.f32.mrf.mxu0
        %v735 = vadd.f32 0.0, %v734
        %736 = vmatmul.f32.gmra.mxu0 %v670
        %v737 = vpop.f32.mrf.mxu0
        %v738 = vadd.f32 0.0, %v737
        %739 = vmatmul.f32.gmra.mxu0 %v673
        %v740 = vpop.f32.mrf.mxu0
        %v741 = vadd.f32 0.0, %v740
        %742 = vdwg.mxu0
        %v743 = vld [vmem:[#allocation3] sm:$0xff]
        %v744 = vld [vmem:[#allocation3 + $0x8] sm:$0xff]
        %v745 = vld [vmem:[#allocation3 + $0x10] sm:$0xff]
        %v746 = vld [vmem:[#allocation3 + $0x18] sm:$0xff]
        %v747 = vld [vmem:[#allocation3 + $0x20] sm:$0xff]
        %v748 = vld [vmem:[#allocation3 + $0x28] sm:$0xff]
        %v749 = vld [vmem:[#allocation3 + $0x30] sm:$0xff]
        %v750 = vld [vmem:[#allocation3 + $0x38] sm:$0xff]
        %v751 = vld [vmem:[#allocation3 + $0x40] sm:$0xff]
        %v752 = vld [vmem:[#allocation3 + $0x48] sm:$0xff]
        %v753 = vld [vmem:[#allocation3 + $0x50] sm:$0xff]
        %v754 = vld [vmem:[#allocation3 + $0x58] sm:$0xff]
        %v755 = vld [vmem:[#allocation3 + $0x60] sm:$0xff]
        %v756 = vld [vmem:[#allocation3 + $0x68] sm:$0xff]
        %v757 = vld [vmem:[#allocation3 + $0x70] sm:$0xff]
        %v758 = vld [vmem:[#allocation3 + $0x78] sm:$0xff]
        %v759 = vadd.f32 %v743, %v696
        %v760 = vadd.f32 %v744, %v699
        %v761 = vadd.f32 %v745, %v702
        %v762 = vadd.f32 %v746, %v705
        %v763 = vadd.f32 %v747, %v708
        %v764 = vadd.f32 %v748, %v711
        %v765 = vadd.f32 %v749, %v714
        %v766 = vadd.f32 %v750, %v717
        %v767 = vadd.f32 %v751, %v720
        %v768 = vadd.f32 %v752, %v723
        %v769 = vadd.f32 %v753, %v726
        %v770 = vadd.f32 %v754, %v729
        %v771 = vadd.f32 %v755, %v732
        %v772 = vadd.f32 %v756, %v735
        %v773 = vadd.f32 %v757, %v738
        %v774 = vadd.f32 %v758, %v741
        %775 = vst [vmem:[#allocation3] sm:$0xff] %v759
        %776 = vst [vmem:[#allocation3 + $0x8] sm:$0xff] %v760
        %777 = vst [vmem:[#allocation3 + $0x10] sm:$0xff] %v761
        %778 = vst [vmem:[#allocation3 + $0x18] sm:$0xff] %v762
        %779 = vst [vmem:[#allocation3 + $0x20] sm:$0xff] %v763
        %780 = vst [vmem:[#allocation3 + $0x28] sm:$0xff] %v764
        %781 = vst [vmem:[#allocation3 + $0x30] sm:$0xff] %v765
        %782 = vst [vmem:[#allocation3 + $0x38] sm:$0xff] %v766
        %783 = vst [vmem:[#allocation3 + $0x40] sm:$0xff] %v767
        %784 = vst [vmem:[#allocation3 + $0x48] sm:$0xff] %v768
        %785 = vst [vmem:[#allocation3 + $0x50] sm:$0xff] %v769
        %786 = vst [vmem:[#allocation3 + $0x58] sm:$0xff] %v770
        %787 = vst [vmem:[#allocation3 + $0x60] sm:$0xff] %v771
        %788 = vst [vmem:[#allocation3 + $0x68] sm:$0xff] %v772
        %789 = vst [vmem:[#allocation3 + $0x70] sm:$0xff] %v773
        %790 = vst [vmem:[#allocation3 + $0x78] sm:$0xff] %v774
        %v791 = vld [vmem:[#allocation2 + $0x1] sm:$0xff]
        %v792 = vld [vmem:[#allocation2 + $0x9] sm:$0xff]
        %v793 = vld [vmem:[#allocation2 + $0x19] sm:$0xff]
        %v794 = vld [vmem:[#allocation2 + $0x21] sm:$0xff]
        %v795 = vld [vmem:[#allocation2 + $0x31] sm:$0xff]
        %v796 = vld [vmem:[#allocation2 + $0x39] sm:$0xff]
        %v797 = vld [vmem:[#allocation2 + $0x49] sm:$0xff]
        %v798 = vld [vmem:[#allocation2 + $0x51] sm:$0xff]
        %v799 = vld [vmem:[#allocation2 + $0x61] sm:$0xff]
        %v800 = vld [vmem:[#allocation2 + $0x69] sm:$0xff]
        %v801 = vld [vmem:[#allocation2 + $0x79] sm:$0xff]
        %v802 = vld [vmem:[#allocation2 + $0x81] sm:$0xff]
        %v803 = vld [vmem:[#allocation2 + $0x91] sm:$0xff]
        %v804 = vld [vmem:[#allocation2 + $0x99] sm:$0xff]
        %v805 = vld [vmem:[#allocation2 + $0xa9] sm:$0xff]
        %v806 = vld [vmem:[#allocation2 + $0xb1] sm:$0xff]
        %v807 = vld [vmem:[#allocation2 + $0xc1] sm:$0xff]
        %v808 = vld [vmem:[#allocation2 + $0xc9] sm:$0xff]
        %v809 = vld [vmem:[#allocation2 + $0xd9] sm:$0xff]
        %v810 = vld [vmem:[#allocation2 + $0xe1] sm:$0xff]
        %s811 = scalar_lea.vmem %s3, 4
        %v812 = vld [vmem:[%s811] sm:$0xf]
        %v814 = vsel %vm348, %v791, 0
        %v817 = vsel %vm348, %v792, 0
        %v820 = vsel %vm348, %v793, 0
        %v823 = vsel %vm348, %v794, 0
        %v826 = vsel %vm348, %v795, 0
        %v829 = vsel %vm348, %v796, 0
        %v832 = vsel %vm348, %v797, 0
        %v835 = vsel %vm348, %v798, 0
        %v838 = vsel %vm348, %v799, 0
        %v841 = vsel %vm348, %v800, 0
        %v844 = vsel %vm348, %v801, 0
        %v847 = vsel %vm348, %v802, 0
        %v850 = vsel %vm348, %v803, 0
        %v853 = vsel %vm348, %v804, 0
        %v856 = vsel %vm348, %v805, 0
        %v859 = vsel %vm348, %v806, 0
        %v862 = vsel %vm458, %v812, 0
        %864 = vmatpush.msra.mxu0 0.0
        %865 = vmatpush.msra.mxu0 0.0
        %866 = vmatpush.msra.mxu0 0.0
        %867 = vmatpush.msra.mxu0 0.0
        %868 = vmatpush.msra.mxu0 0.0
        %869 = vmatpush.msra.mxu0 0.0
        %870 = vmatpush.msra.mxu0 0.0
        %871 = vmatpush.msra.mxu0 0.0
        %872 = vmatpush.msra.mxu0 0.0
        %873 = vmatpush.msra.mxu0 0.0
        %874 = vmatpush.msra.mxu0 0.0
        %875 = vmatpush.msra.mxu0 0.0
        %876 = vmatpush.msra.mxu0 0.0
        %877 = vmatpush.msra.mxu0 0.0
        %878 = vmatpush.msra.mxu0 0.0
        %879 = vmatpush.msra.mxu0 %v862
        %880 = vmatmul.f32.gmra.mxu0 %v814
        %v881 = vpop.f32.mrf.mxu0
        %v882 = vadd.f32 0.0, %v881
        %883 = vmatmul.f32.gmra.mxu0 %v817
        %v884 = vpop.f32.mrf.mxu0
        %v885 = vadd.f32 0.0, %v884
        %886 = vmatmul.f32.gmra.mxu0 %v820
        %v887 = vpop.f32.mrf.mxu0
        %v888 = vadd.f32 0.0, %v887
        %889 = vmatmul.f32.gmra.mxu0 %v823
        %v890 = vpop.f32.mrf.mxu0
        %v891 = vadd.f32 0.0, %v890
        %892 = vmatmul.f32.gmra.mxu0 %v826
        %v893 = vpop.f32.mrf.mxu0
        %v894 = vadd.f32 0.0, %v893
        %895 = vmatmul.f32.gmra.mxu0 %v829
        %v896 = vpop.f32.mrf.mxu0
        %v897 = vadd.f32 0.0, %v896
        %898 = vmatmul.f32.gmra.mxu0 %v832
        %v899 = vpop.f32.mrf.mxu0
        %v900 = vadd.f32 0.0, %v899
        %901 = vmatmul.f32.gmra.mxu0 %v835
        %v902 = vpop.f32.mrf.mxu0
        %v903 = vadd.f32 0.0, %v902
        %904 = vmatmul.f32.gmra.mxu0 %v838
        %v905 = vpop.f32.mrf.mxu0
        %v906 = vadd.f32 0.0, %v905
        %907 = vmatmul.f32.gmra.mxu0 %v841
        %v908 = vpop.f32.mrf.mxu0
        %v909 = vadd.f32 0.0, %v908
        %910 = vmatmul.f32.gmra.mxu0 %v844
        %v911 = vpop.f32.mrf.mxu0
        %v912 = vadd.f32 0.0, %v911
        %913 = vmatmul.f32.gmra.mxu0 %v847
        %v914 = vpop.f32.mrf.mxu0
        %v915 = vadd.f32 0.0, %v914
        %916 = vmatmul.f32.gmra.mxu0 %v850
        %v917 = vpop.f32.mrf.mxu0
        %v918 = vadd.f32 0.0, %v917
        %919 = vmatmul.f32.gmra.mxu0 %v853
        %v920 = vpop.f32.mrf.mxu0
        %v921 = vadd.f32 0.0, %v920
        %922 = vmatmul.f32.gmra.mxu0 %v856
        %v923 = vpop.f32.mrf.mxu0
        %v924 = vadd.f32 0.0, %v923
        %925 = vmatmul.f32.gmra.mxu0 %v859
        %v926 = vpop.f32.mrf.mxu0
        %v927 = vadd.f32 0.0, %v926
        %928 = vdwg.mxu0
        %v929 = vld [vmem:[#allocation3] sm:$0xff]
        %v930 = vld [vmem:[#allocation3 + $0x8] sm:$0xff]
        %v931 = vld [vmem:[#allocation3 + $0x10] sm:$0xff]
        %v932 = vld [vmem:[#allocation3 + $0x18] sm:$0xff]
        %v933 = vld [vmem:[#allocation3 + $0x20] sm:$0xff]
        %v934 = vld [vmem:[#allocation3 + $0x28] sm:$0xff]
        %v935 = vld [vmem:[#allocation3 + $0x30] sm:$0xff]
        %v936 = vld [vmem:[#allocation3 + $0x38] sm:$0xff]
        %v937 = vld [vmem:[#allocation3 + $0x40] sm:$0xff]
        %v938 = vld [vmem:[#allocation3 + $0x48] sm:$0xff]
        %v939 = vld [vmem:[#allocation3 + $0x50] sm:$0xff]
        %v940 = vld [vmem:[#allocation3 + $0x58] sm:$0xff]
        %v941 = vld [vmem:[#allocation3 + $0x60] sm:$0xff]
        %v942 = vld [vmem:[#allocation3 + $0x68] sm:$0xff]
        %v943 = vld [vmem:[#allocation3 + $0x70] sm:$0xff]
        %v944 = vld [vmem:[#allocation3 + $0x78] sm:$0xff]
        %v945 = vadd.f32 %v929, %v882
        %v946 = vadd.f32 %v930, %v885
        %v947 = vadd.f32 %v931, %v888
        %v948 = vadd.f32 %v932, %v891
        %v949 = vadd.f32 %v933, %v894
        %v950 = vadd.f32 %v934, %v897
        %v951 = vadd.f32 %v935, %v900
        %v952 = vadd.f32 %v936, %v903
        %v953 = vadd.f32 %v937, %v906
        %v954 = vadd.f32 %v938, %v909
        %v955 = vadd.f32 %v939, %v912
        %v956 = vadd.f32 %v940, %v915
        %v957 = vadd.f32 %v941, %v918
        %v958 = vadd.f32 %v942, %v921
        %v959 = vadd.f32 %v943, %v924
        %v960 = vadd.f32 %v944, %v927
        %961 = vst [vmem:[#allocation3] sm:$0xff] %v945
        %962 = vst [vmem:[#allocation3 + $0x8] sm:$0xff] %v946
        %963 = vst [vmem:[#allocation3 + $0x10] sm:$0xff] %v947
        %964 = vst [vmem:[#allocation3 + $0x18] sm:$0xff] %v948
        %965 = vst [vmem:[#allocation3 + $0x20] sm:$0xff] %v949
        %966 = vst [vmem:[#allocation3 + $0x28] sm:$0xff] %v950
        %967 = vst [vmem:[#allocation3 + $0x30] sm:$0xff] %v951
        %968 = vst [vmem:[#allocation3 + $0x38] sm:$0xff] %v952
        %969 = vst [vmem:[#allocation3 + $0x40] sm:$0xff] %v953
        %970 = vst [vmem:[#allocation3 + $0x48] sm:$0xff] %v954
        %971 = vst [vmem:[#allocation3 + $0x50] sm:$0xff] %v955
        %972 = vst [vmem:[#allocation3 + $0x58] sm:$0xff] %v956
        %973 = vst [vmem:[#allocation3 + $0x60] sm:$0xff] %v957
        %974 = vst [vmem:[#allocation3 + $0x68] sm:$0xff] %v958
        %975 = vst [vmem:[#allocation3 + $0x70] sm:$0xff] %v959
        %976 = vst [vmem:[#allocation3 + $0x78] sm:$0xff] %v960
        %s977 = scalar_lea.vmem %s3, 16
        %v978 = vld [vmem:[%s977] sm:$0xf]
        %v980 = vsel %vm348, %v807, 0
        %v983 = vsel %vm348, %v808, 0
        %v986 = vsel %vm458, %v978, 0
        %988 = vmatpush.msra.mxu0 0.0
        %989 = vmatpush.msra.mxu0 0.0
        %990 = vmatpush.msra.mxu0 0.0
        %991 = vmatpush.msra.mxu0 0.0
        %992 = vmatpush.msra.mxu0 0.0
        %993 = vmatpush.msra.mxu0 0.0
        %994 = vmatpush.msra.mxu0 0.0
        %995 = vmatpush.msra.mxu0 0.0
        %996 = vmatpush.msra.mxu0 0.0
        %997 = vmatpush.msra.mxu0 0.0
        %998 = vmatpush.msra.mxu0 0.0
        %999 = vmatpush.msra.mxu0 0.0
        %1000 = vmatpush.msra.mxu0 0.0
        %1001 = vmatpush.msra.mxu0 0.0
        %1002 = vmatpush.msra.mxu0 0.0
        %1003 = vmatpush.msra.mxu0 %v986
        %1004 = vmatmul.f32.gmra.mxu0 %v820
        %v1005 = vpop.f32.mrf.mxu0
        %v1006 = vadd.f32 0.0, %v1005
        %1007 = vmatmul.f32.gmra.mxu0 %v823
        %v1008 = vpop.f32.mrf.mxu0
        %v1009 = vadd.f32 0.0, %v1008
        %1010 = vmatmul.f32.gmra.mxu0 %v826
        %v1011 = vpop.f32.mrf.mxu0
        %v1012 = vadd.f32 0.0, %v1011
        %1013 = vmatmul.f32.gmra.mxu0 %v829
        %v1014 = vpop.f32.mrf.mxu0
        %v1015 = vadd.f32 0.0, %v1014
        %1016 = vmatmul.f32.gmra.mxu0 %v832
        %v1017 = vpop.f32.mrf.mxu0
        %v1018 = vadd.f32 0.0, %v1017
        %1019 = vmatmul.f32.gmra.mxu0 %v835
        %v1020 = vpop.f32.mrf.mxu0
        %v1021 = vadd.f32 0.0, %v1020
        %1022 = vmatmul.f32.gmra.mxu0 %v838
        %v1023 = vpop.f32.mrf.mxu0
        %v1024 = vadd.f32 0.0, %v1023
        %1025 = vmatmul.f32.gmra.mxu0 %v841
        %v1026 = vpop.f32.mrf.mxu0
        %v1027 = vadd.f32 0.0, %v1026
        %1028 = vmatmul.f32.gmra.mxu0 %v844
        %v1029 = vpop.f32.mrf.mxu0
        %v1030 = vadd.f32 0.0, %v1029
        %1031 = vmatmul.f32.gmra.mxu0 %v847
        %v1032 = vpop.f32.mrf.mxu0
        %v1033 = vadd.f32 0.0, %v1032
        %1034 = vmatmul.f32.gmra.mxu0 %v850
        %v1035 = vpop.f32.mrf.mxu0
        %v1036 = vadd.f32 0.0, %v1035
        %1037 = vmatmul.f32.gmra.mxu0 %v853
        %v1038 = vpop.f32.mrf.mxu0
        %v1039 = vadd.f32 0.0, %v1038
        %1040 = vmatmul.f32.gmra.mxu0 %v856
        %v1041 = vpop.f32.mrf.mxu0
        %v1042 = vadd.f32 0.0, %v1041
        %1043 = vmatmul.f32.gmra.mxu0 %v859
        %v1044 = vpop.f32.mrf.mxu0
        %v1045 = vadd.f32 0.0, %v1044
        %1046 = vmatmul.f32.gmra.mxu0 %v980
        %v1047 = vpop.f32.mrf.mxu0
        %v1048 = vadd.f32 0.0, %v1047
        %1049 = vmatmul.f32.gmra.mxu0 %v983
        %v1050 = vpop.f32.mrf.mxu0
        %v1051 = vadd.f32 0.0, %v1050
        %1052 = vdwg.mxu0
        %v1053 = vld [vmem:[#allocation3] sm:$0xff]
        %v1054 = vld [vmem:[#allocation3 + $0x8] sm:$0xff]
        %v1055 = vld [vmem:[#allocation3 + $0x10] sm:$0xff]
        %v1056 = vld [vmem:[#allocation3 + $0x18] sm:$0xff]
        %v1057 = vld [vmem:[#allocation3 + $0x20] sm:$0xff]
        %v1058 = vld [vmem:[#allocation3 + $0x28] sm:$0xff]
        %v1059 = vld [vmem:[#allocation3 + $0x30] sm:$0xff]
        %v1060 = vld [vmem:[#allocation3 + $0x38] sm:$0xff]
        %v1061 = vld [vmem:[#allocation3 + $0x40] sm:$0xff]
        %v1062 = vld [vmem:[#allocation3 + $0x48] sm:$0xff]
        %v1063 = vld [vmem:[#allocation3 + $0x50] sm:$0xff]
        %v1064 = vld [vmem:[#allocation3 + $0x58] sm:$0xff]
        %v1065 = vld [vmem:[#allocation3 + $0x60] sm:$0xff]
        %v1066 = vld [vmem:[#allocation3 + $0x68] sm:$0xff]
        %v1067 = vld [vmem:[#allocation3 + $0x70] sm:$0xff]
        %v1068 = vld [vmem:[#allocation3 + $0x78] sm:$0xff]
        %v1069 = vadd.f32 %v1053, %v1006
        %v1070 = vadd.f32 %v1054, %v1009
        %v1071 = vadd.f32 %v1055, %v1012
        %v1072 = vadd.f32 %v1056, %v1015
        %v1073 = vadd.f32 %v1057, %v1018
        %v1074 = vadd.f32 %v1058, %v1021
        %v1075 = vadd.f32 %v1059, %v1024
        %v1076 = vadd.f32 %v1060, %v1027
        %v1077 = vadd.f32 %v1061, %v1030
        %v1078 = vadd.f32 %v1062, %v1033
        %v1079 = vadd.f32 %v1063, %v1036
        %v1080 = vadd.f32 %v1064, %v1039
        %v1081 = vadd.f32 %v1065, %v1042
        %v1082 = vadd.f32 %v1066, %v1045
        %v1083 = vadd.f32 %v1067, %v1048
        %v1084 = vadd.f32 %v1068, %v1051
        %1085 = vst [vmem:[#allocation3] sm:$0xff] %v1069
        %1086 = vst [vmem:[#allocation3 + $0x8] sm:$0xff] %v1070
        %1087 = vst [vmem:[#allocation3 + $0x10] sm:$0xff] %v1071
        %1088 = vst [vmem:[#allocation3 + $0x18] sm:$0xff] %v1072
        %1089 = vst [vmem:[#allocation3 + $0x20] sm:$0xff] %v1073
        %1090 = vst [vmem:[#allocation3 + $0x28] sm:$0xff] %v1074
        %1091 = vst [vmem:[#allocation3 + $0x30] sm:$0xff] %v1075
        %1092 = vst [vmem:[#allocation3 + $0x38] sm:$0xff] %v1076
        %1093 = vst [vmem:[#allocation3 + $0x40] sm:$0xff] %v1077
        %1094 = vst [vmem:[#allocation3 + $0x48] sm:$0xff] %v1078
        %1095 = vst [vmem:[#allocation3 + $0x50] sm:$0xff] %v1079
        %1096 = vst [vmem:[#allocation3 + $0x58] sm:$0xff] %v1080
        %1097 = vst [vmem:[#allocation3 + $0x60] sm:$0xff] %v1081
        %1098 = vst [vmem:[#allocation3 + $0x68] sm:$0xff] %v1082
        %1099 = vst [vmem:[#allocation3 + $0x70] sm:$0xff] %v1083
        %1100 = vst [vmem:[#allocation3 + $0x78] sm:$0xff] %v1084
        %s1101 = scalar_lea.vmem %s3, 28
        %v1102 = vld [vmem:[%s1101] sm:$0xf]
        %v1104 = vsel %vm348, %v809, 0
        %v1107 = vsel %vm348, %v810, 0
        %v1110 = vsel %vm458, %v1102, 0
        %1112 = vmatpush.msra.mxu0 0.0
        %1113 = vmatpush.msra.mxu0 0.0
        %1114 = vmatpush.msra.mxu0 0.0
        %1115 = vmatpush.msra.mxu0 0.0
        %1116 = vmatpush.msra.mxu0 0.0
        %1117 = vmatpush.msra.mxu0 0.0
        %1118 = vmatpush.msra.mxu0 0.0
        %1119 = vmatpush.msra.mxu0 0.0
        %1120 = vmatpush.msra.mxu0 0.0
        %1121 = vmatpush.msra.mxu0 0.0
        %1122 = vmatpush.msra.mxu0 0.0
        %1123 = vmatpush.msra.mxu0 0.0
        %1124 = vmatpush.msra.mxu0 0.0
        %1125 = vmatpush.msra.mxu0 0.0
        %1126 = vmatpush.msra.mxu0 0.0
        %1127 = vmatpush.msra.mxu0 %v1110
        %1128 = vmatmul.f32.gmra.mxu0 %v826
        %v1129 = vpop.f32.mrf.mxu0
        %v1130 = vadd.f32 0.0, %v1129
        %1131 = vmatmul.f32.gmra.mxu0 %v829
        %v1132 = vpop.f32.mrf.mxu0
        %v1133 = vadd.f32 0.0, %v1132
        %1134 = vmatmul.f32.gmra.mxu0 %v832
        %v1135 = vpop.f32.mrf.mxu0
        %v1136 = vadd.f32 0.0, %v1135
        %1137 = vmatmul.f32.gmra.mxu0 %v835
        %v1138 = vpop.f32.mrf.mxu0
        %v1139 = vadd.f32 0.0, %v1138
        %1140 = vmatmul.f32.gmra.mxu0 %v838
        %v1141 = vpop.f32.mrf.mxu0
        %v1142 = vadd.f32 0.0, %v1141
        %1143 = vmatmul.f32.gmra.mxu0 %v841
        %v1144 = vpop.f32.mrf.mxu0
        %v1145 = vadd.f32 0.0, %v1144
        %1146 = vmatmul.f32.gmra.mxu0 %v844
        %v1147 = vpop.f32.mrf.mxu0
        %v1148 = vadd.f32 0.0, %v1147
        %1149 = vmatmul.f32.gmra.mxu0 %v847
        %v1150 = vpop.f32.mrf.mxu0
        %v1151 = vadd.f32 0.0, %v1150
        %1152 = vmatmul.f32.gmra.mxu0 %v850
        %v1153 = vpop.f32.mrf.mxu0
        %v1154 = vadd.f32 0.0, %v1153
        %1155 = vmatmul.f32.gmra.mxu0 %v853
        %v1156 = vpop.f32.mrf.mxu0
        %v1157 = vadd.f32 0.0, %v1156
        %1158 = vmatmul.f32.gmra.mxu0 %v856
        %v1159 = vpop.f32.mrf.mxu0
        %v1160 = vadd.f32 0.0, %v1159
        %1161 = vmatmul.f32.gmra.mxu0 %v859
        %v1162 = vpop.f32.mrf.mxu0
        %v1163 = vadd.f32 0.0, %v1162
        %1164 = vmatmul.f32.gmra.mxu0 %v980
        %v1165 = vpop.f32.mrf.mxu0
        %v1166 = vadd.f32 0.0, %v1165
        %1167 = vmatmul.f32.gmra.mxu0 %v983
        %v1168 = vpop.f32.mrf.mxu0
        %v1169 = vadd.f32 0.0, %v1168
        %1170 = vmatmul.f32.gmra.mxu0 %v1104
        %v1171 = vpop.f32.mrf.mxu0
        %v1172 = vadd.f32 0.0, %v1171
        %1173 = vmatmul.f32.gmra.mxu0 %v1107
        %v1174 = vpop.f32.mrf.mxu0
        %v1175 = vadd.f32 0.0, %v1174
        %1176 = vdwg.mxu0
        %v1177 = vld [vmem:[#allocation3] sm:$0xff]
        %v1178 = vld [vmem:[#allocation3 + $0x8] sm:$0xff]
        %v1179 = vld [vmem:[#allocation3 + $0x10] sm:$0xff]
        %v1180 = vld [vmem:[#allocation3 + $0x18] sm:$0xff]
        %v1181 = vld [vmem:[#allocation3 + $0x20] sm:$0xff]
        %v1182 = vld [vmem:[#allocation3 + $0x28] sm:$0xff]
        %v1183 = vld [vmem:[#allocation3 + $0x30] sm:$0xff]
        %v1184 = vld [vmem:[#allocation3 + $0x38] sm:$0xff]
        %v1185 = vld [vmem:[#allocation3 + $0x40] sm:$0xff]
        %v1186 = vld [vmem:[#allocation3 + $0x48] sm:$0xff]
        %v1187 = vld [vmem:[#allocation3 + $0x50] sm:$0xff]
        %v1188 = vld [vmem:[#allocation3 + $0x58] sm:$0xff]
        %v1189 = vld [vmem:[#allocation3 + $0x60] sm:$0xff]
        %v1190 = vld [vmem:[#allocation3 + $0x68] sm:$0xff]
        %v1191 = vld [vmem:[#allocation3 + $0x70] sm:$0xff]
        %v1192 = vld [vmem:[#allocation3 + $0x78] sm:$0xff]
        %v1193 = vadd.f32 %v1177, %v1130
        %v1194 = vadd.f32 %v1178, %v1133
        %v1195 = vadd.f32 %v1179, %v1136
        %v1196 = vadd.f32 %v1180, %v1139
        %v1197 = vadd.f32 %v1181, %v1142
        %v1198 = vadd.f32 %v1182, %v1145
        %v1199 = vadd.f32 %v1183, %v1148
        %v1200 = vadd.f32 %v1184, %v1151
        %v1201 = vadd.f32 %v1185, %v1154
        %v1202 = vadd.f32 %v1186, %v1157
        %v1203 = vadd.f32 %v1187, %v1160
        %v1204 = vadd.f32 %v1188, %v1163
        %v1205 = vadd.f32 %v1189, %v1166
        %v1206 = vadd.f32 %v1190, %v1169
        %v1207 = vadd.f32 %v1191, %v1172
        %v1208 = vadd.f32 %v1192, %v1175
        %1209 = vst [vmem:[#allocation3] sm:$0xff] %v1193
        %1210 = vst [vmem:[#allocation3 + $0x8] sm:$0xff] %v1194
        %1211 = vst [vmem:[#allocation3 + $0x10] sm:$0xff] %v1195
        %1212 = vst [vmem:[#allocation3 + $0x18] sm:$0xff] %v1196
        %1213 = vst [vmem:[#allocation3 + $0x20] sm:$0xff] %v1197
        %1214 = vst [vmem:[#allocation3 + $0x28] sm:$0xff] %v1198
        %1215 = vst [vmem:[#allocation3 + $0x30] sm:$0xff] %v1199
        %1216 = vst [vmem:[#allocation3 + $0x38] sm:$0xff] %v1200
        %1217 = vst [vmem:[#allocation3 + $0x40] sm:$0xff] %v1201
        %1218 = vst [vmem:[#allocation3 + $0x48] sm:$0xff] %v1202
        %1219 = vst [vmem:[#allocation3 + $0x50] sm:$0xff] %v1203
        %1220 = vst [vmem:[#allocation3 + $0x58] sm:$0xff] %v1204
        %1221 = vst [vmem:[#allocation3 + $0x60] sm:$0xff] %v1205
        %1222 = vst [vmem:[#allocation3 + $0x68] sm:$0xff] %v1206
        %1223 = vst [vmem:[#allocation3 + $0x70] sm:$0xff] %v1207
        %1224 = vst [vmem:[#allocation3 + $0x78] sm:$0xff] %v1208
        %v1225 = vld [vmem:[#allocation2 + $0x2] sm:$0xff]
        %v1226 = vld [vmem:[#allocation2 + $0xa] sm:$0xff]
        %v1227 = vld [vmem:[#allocation2 + $0x1a] sm:$0xff]
        %v1228 = vld [vmem:[#allocation2 + $0x22] sm:$0xff]
        %v1229 = vld [vmem:[#allocation2 + $0x32] sm:$0xff]
        %v1230 = vld [vmem:[#allocation2 + $0x3a] sm:$0xff]
        %v1231 = vld [vmem:[#allocation2 + $0x4a] sm:$0xff]
        %v1232 = vld [vmem:[#allocation2 + $0x52] sm:$0xff]
        %v1233 = vld [vmem:[#allocation2 + $0x62] sm:$0xff]
        %v1234 = vld [vmem:[#allocation2 + $0x6a] sm:$0xff]
        %v1235 = vld [vmem:[#allocation2 + $0x7a] sm:$0xff]
        %v1236 = vld [vmem:[#allocation2 + $0x82] sm:$0xff]
        %v1237 = vld [vmem:[#allocation2 + $0x92] sm:$0xff]
        %v1238 = vld [vmem:[#allocation2 + $0x9a] sm:$0xff]
        %v1239 = vld [vmem:[#allocation2 + $0xaa] sm:$0xff]
        %v1240 = vld [vmem:[#allocation2 + $0xb2] sm:$0xff]
        %v1241 = vld [vmem:[#allocation2 + $0xc2] sm:$0xff]
        %v1242 = vld [vmem:[#allocation2 + $0xca] sm:$0xff]
        %v1243 = vld [vmem:[#allocation2 + $0xda] sm:$0xff]
        %v1244 = vld [vmem:[#allocation2 + $0xe2] sm:$0xff]
        %s1245 = scalar_lea.vmem %s3, 8
        %v1246 = vld [vmem:[%s1245] sm:$0xf]
        %v1248 = vsel %vm348, %v1225, 0
        %v1251 = vsel %vm348, %v1226, 0
        %v1254 = vsel %vm348, %v1227, 0
        %v1257 = vsel %vm348, %v1228, 0
        %v1260 = vsel %vm348, %v1229, 0
        %v1263 = vsel %vm348, %v1230, 0
        %v1266 = vsel %vm348, %v1231, 0
        %v1269 = vsel %vm348, %v1232, 0
        %v1272 = vsel %vm348, %v1233, 0
        %v1275 = vsel %vm348, %v1234, 0
        %v1278 = vsel %vm348, %v1235, 0
        %v1281 = vsel %vm348, %v1236, 0
        %v1284 = vsel %vm348, %v1237, 0
        %v1287 = vsel %vm348, %v1238, 0
        %v1290 = vsel %vm348, %v1239, 0
        %v1293 = vsel %vm348, %v1240, 0
        %v1296 = vsel %vm458, %v1246, 0
        %1298 = vmatpush.msra.mxu0 0.0
        %1299 = vmatpush.msra.mxu0 0.0
        %1300 = vmatpush.msra.mxu0 0.0
        %1301 = vmatpush.msra.mxu0 0.0
        %1302 = vmatpush.msra.mxu0 0.0
        %1303 = vmatpush.msra.mxu0 0.0
        %1304 = vmatpush.msra.mxu0 0.0
        %1305 = vmatpush.msra.mxu0 0.0
        %1306 = vmatpush.msra.mxu0 0.0
        %1307 = vmatpush.msra.mxu0 0.0
        %1308 = vmatpush.msra.mxu0 0.0
        %1309 = vmatpush.msra.mxu0 0.0
        %1310 = vmatpush.msra.mxu0 0.0
        %1311 = vmatpush.msra.mxu0 0.0
        %1312 = vmatpush.msra.mxu0 0.0
        %1313 = vmatpush.msra.mxu0 %v1296
        %1314 = vmatmul.f32.gmra.mxu0 %v1248
        %v1315 = vpop.f32.mrf.mxu0
        %v1316 = vadd.f32 0.0, %v1315
        %1317 = vmatmul.f32.gmra.mxu0 %v1251
        %v1318 = vpop.f32.mrf.mxu0
        %v1319 = vadd.f32 0.0, %v1318
        %1320 = vmatmul.f32.gmra.mxu0 %v1254
        %v1321 = vpop.f32.mrf.mxu0
        %v1322 = vadd.f32 0.0, %v1321
        %1323 = vmatmul.f32.gmra.mxu0 %v1257
        %v1324 = vpop.f32.mrf.mxu0
        %v1325 = vadd.f32 0.0, %v1324
        %1326 = vmatmul.f32.gmra.mxu0 %v1260
        %v1327 = vpop.f32.mrf.mxu0
        %v1328 = vadd.f32 0.0, %v1327
        %1329 = vmatmul.f32.gmra.mxu0 %v1263
        %v1330 = vpop.f32.mrf.mxu0
        %v1331 = vadd.f32 0.0, %v1330
        %1332 = vmatmul.f32.gmra.mxu0 %v1266
        %v1333 = vpop.f32.mrf.mxu0
        %v1334 = vadd.f32 0.0, %v1333
        %1335 = vmatmul.f32.gmra.mxu0 %v1269
        %v1336 = vpop.f32.mrf.mxu0
        %v1337 = vadd.f32 0.0, %v1336
        %1338 = vmatmul.f32.gmra.mxu0 %v1272
        %v1339 = vpop.f32.mrf.mxu0
        %v1340 = vadd.f32 0.0, %v1339
        %1341 = vmatmul.f32.gmra.mxu0 %v1275
        %v1342 = vpop.f32.mrf.mxu0
        %v1343 = vadd.f32 0.0, %v1342
        %1344 = vmatmul.f32.gmra.mxu0 %v1278
        %v1345 = vpop.f32.mrf.mxu0
        %v1346 = vadd.f32 0.0, %v1345
        %1347 = vmatmul.f32.gmra.mxu0 %v1281
        %v1348 = vpop.f32.mrf.mxu0
        %v1349 = vadd.f32 0.0, %v1348
        %1350 = vmatmul.f32.gmra.mxu0 %v1284
        %v1351 = vpop.f32.mrf.mxu0
        %v1352 = vadd.f32 0.0, %v1351
        %1353 = vmatmul.f32.gmra.mxu0 %v1287
        %v1354 = vpop.f32.mrf.mxu0
        %v1355 = vadd.f32 0.0, %v1354
        %1356 = vmatmul.f32.gmra.mxu0 %v1290
        %v1357 = vpop.f32.mrf.mxu0
        %v1358 = vadd.f32 0.0, %v1357
        %1359 = vmatmul.f32.gmra.mxu0 %v1293
        %v1360 = vpop.f32.mrf.mxu0
        %v1361 = vadd.f32 0.0, %v1360
        %1362 = vdwg.mxu0
        %v1363 = vld [vmem:[#allocation3] sm:$0xff]
        %v1364 = vld [vmem:[#allocation3 + $0x8] sm:$0xff]
        %v1365 = vld [vmem:[#allocation3 + $0x10] sm:$0xff]
        %v1366 = vld [vmem:[#allocation3 + $0x18] sm:$0xff]
        %v1367 = vld [vmem:[#allocation3 + $0x20] sm:$0xff]
        %v1368 = vld [vmem:[#allocation3 + $0x28] sm:$0xff]
        %v1369 = vld [vmem:[#allocation3 + $0x30] sm:$0xff]
        %v1370 = vld [vmem:[#allocation3 + $0x38] sm:$0xff]
        %v1371 = vld [vmem:[#allocation3 + $0x40] sm:$0xff]
        %v1372 = vld [vmem:[#allocation3 + $0x48] sm:$0xff]
        %v1373 = vld [vmem:[#allocation3 + $0x50] sm:$0xff]
        %v1374 = vld [vmem:[#allocation3 + $0x58] sm:$0xff]
        %v1375 = vld [vmem:[#allocation3 + $0x60] sm:$0xff]
        %v1376 = vld [vmem:[#allocation3 + $0x68] sm:$0xff]
        %v1377 = vld [vmem:[#allocation3 + $0x70] sm:$0xff]
        %v1378 = vld [vmem:[#allocation3 + $0x78] sm:$0xff]
        %v1379 = vadd.f32 %v1363, %v1316
        %v1380 = vadd.f32 %v1364, %v1319
        %v1381 = vadd.f32 %v1365, %v1322
        %v1382 = vadd.f32 %v1366, %v1325
        %v1383 = vadd.f32 %v1367, %v1328
        %v1384 = vadd.f32 %v1368, %v1331
        %v1385 = vadd.f32 %v1369, %v1334
        %v1386 = vadd.f32 %v1370, %v1337
        %v1387 = vadd.f32 %v1371, %v1340
        %v1388 = vadd.f32 %v1372, %v1343
        %v1389 = vadd.f32 %v1373, %v1346
        %v1390 = vadd.f32 %v1374, %v1349
        %v1391 = vadd.f32 %v1375, %v1352
        %v1392 = vadd.f32 %v1376, %v1355
        %v1393 = vadd.f32 %v1377, %v1358
        %v1394 = vadd.f32 %v1378, %v1361
        %1395 = vst [vmem:[#allocation3] sm:$0xff] %v1379
        %1396 = vst [vmem:[#allocation3 + $0x8] sm:$0xff] %v1380
        %1397 = vst [vmem:[#allocation3 + $0x10] sm:$0xff] %v1381
        %1398 = vst [vmem:[#allocation3 + $0x18] sm:$0xff] %v1382
        %1399 = vst [vmem:[#allocation3 + $0x20] sm:$0xff] %v1383
        %1400 = vst [vmem:[#allocation3 + $0x28] sm:$0xff] %v1384
        %1401 = vst [vmem:[#allocation3 + $0x30] sm:$0xff] %v1385
        %1402 = vst [vmem:[#allocation3 + $0x38] sm:$0xff] %v1386
        %1403 = vst [vmem:[#allocation3 + $0x40] sm:$0xff] %v1387
        %1404 = vst [vmem:[#allocation3 + $0x48] sm:$0xff] %v1388
        %1405 = vst [vmem:[#allocation3 + $0x50] sm:$0xff] %v1389
        %1406 = vst [vmem:[#allocation3 + $0x58] sm:$0xff] %v1390
        %1407 = vst [vmem:[#allocation3 + $0x60] sm:$0xff] %v1391
        %1408 = vst [vmem:[#allocation3 + $0x68] sm:$0xff] %v1392
        %1409 = vst [vmem:[#allocation3 + $0x70] sm:$0xff] %v1393
        %1410 = vst [vmem:[#allocation3 + $0x78] sm:$0xff] %v1394
        %s1411 = scalar_lea.vmem %s3, 20
        %v1412 = vld [vmem:[%s1411] sm:$0xf]
        %v1414 = vsel %vm348, %v1241, 0
        %v1417 = vsel %vm348, %v1242, 0
        %v1420 = vsel %vm458, %v1412, 0
        %1422 = vmatpush.msra.mxu0 0.0
        %1423 = vmatpush.msra.mxu0 0.0
        %1424 = vmatpush.msra.mxu0 0.0
        %1425 = vmatpush.msra.mxu0 0.0
        %1426 = vmatpush.msra.mxu0 0.0
        %1427 = vmatpush.msra.mxu0 0.0
        %1428 = vmatpush.msra.mxu0 0.0
        %1429 = vmatpush.msra.mxu0 0.0
        %1430 = vmatpush.msra.mxu0 0.0
        %1431 = vmatpush.msra.mxu0 0.0
        %1432 = vmatpush.msra.mxu0 0.0
        %1433 = vmatpush.msra.mxu0 0.0
        %1434 = vmatpush.msra.mxu0 0.0
        %1435 = vmatpush.msra.mxu0 0.0
        %1436 = vmatpush.msra.mxu0 0.0
        %1437 = vmatpush.msra.mxu0 %v1420
        %1438 = vmatmul.f32.gmra.mxu0 %v1254
        %v1439 = vpop.f32.mrf.mxu0
        %v1440 = vadd.f32 0.0, %v1439
        %1441 = vmatmul.f32.gmra.mxu0 %v1257
        %v1442 = vpop.f32.mrf.mxu0
        %v1443 = vadd.f32 0.0, %v1442
        %1444 = vmatmul.f32.gmra.mxu0 %v1260
        %v1445 = vpop.f32.mrf.mxu0
        %v1446 = vadd.f32 0.0, %v1445
        %1447 = vmatmul.f32.gmra.mxu0 %v1263
        %v1448 = vpop.f32.mrf.mxu0
        %v1449 = vadd.f32 0.0, %v1448
        %1450 = vmatmul.f32.gmra.mxu0 %v1266
        %v1451 = vpop.f32.mrf.mxu0
        %v1452 = vadd.f32 0.0, %v1451
        %1453 = vmatmul.f32.gmra.mxu0 %v1269
        %v1454 = vpop.f32.mrf.mxu0
        %v1455 = vadd.f32 0.0, %v1454
        %1456 = vmatmul.f32.gmra.mxu0 %v1272
        %v1457 = vpop.f32.mrf.mxu0
        %v1458 = vadd.f32 0.0, %v1457
        %1459 = vmatmul.f32.gmra.mxu0 %v1275
        %v1460 = vpop.f32.mrf.mxu0
        %v1461 = vadd.f32 0.0, %v1460
        %1462 = vmatmul.f32.gmra.mxu0 %v1278
        %v1463 = vpop.f32.mrf.mxu0
        %v1464 = vadd.f32 0.0, %v1463
        %1465 = vmatmul.f32.gmra.mxu0 %v1281
        %v1466 = vpop.f32.mrf.mxu0
        %v1467 = vadd.f32 0.0, %v1466
        %1468 = vmatmul.f32.gmra.mxu0 %v1284
        %v1469 = vpop.f32.mrf.mxu0
        %v1470 = vadd.f32 0.0, %v1469
        %1471 = vmatmul.f32.gmra.mxu0 %v1287
        %v1472 = vpop.f32.mrf.mxu0
        %v1473 = vadd.f32 0.0, %v1472
        %1474 = vmatmul.f32.gmra.mxu0 %v1290
        %v1475 = vpop.f32.mrf.mxu0
        %v1476 = vadd.f32 0.0, %v1475
        %1477 = vmatmul.f32.gmra.mxu0 %v1293
        %v1478 = vpop.f32.mrf.mxu0
        %v1479 = vadd.f32 0.0, %v1478
        %1480 = vmatmul.f32.gmra.mxu0 %v1414
        %v1481 = vpop.f32.mrf.mxu0
        %v1482 = vadd.f32 0.0, %v1481
        %1483 = vmatmul.f32.gmra.mxu0 %v1417
        %v1484 = vpop.f32.mrf.mxu0
        %v1485 = vadd.f32 0.0, %v1484
        %1486 = vdwg.mxu0
        %v1487 = vld [vmem:[#allocation3] sm:$0xff]
        %v1488 = vld [vmem:[#allocation3 + $0x8] sm:$0xff]
        %v1489 = vld [vmem:[#allocation3 + $0x10] sm:$0xff]
        %v1490 = vld [vmem:[#allocation3 + $0x18] sm:$0xff]
        %v1491 = vld [vmem:[#allocation3 + $0x20] sm:$0xff]
        %v1492 = vld [vmem:[#allocation3 + $0x28] sm:$0xff]
        %v1493 = vld [vmem:[#allocation3 + $0x30] sm:$0xff]
        %v1494 = vld [vmem:[#allocation3 + $0x38] sm:$0xff]
        %v1495 = vld [vmem:[#allocation3 + $0x40] sm:$0xff]
        %v1496 = vld [vmem:[#allocation3 + $0x48] sm:$0xff]
        %v1497 = vld [vmem:[#allocation3 + $0x50] sm:$0xff]
        %v1498 = vld [vmem:[#allocation3 + $0x58] sm:$0xff]
        %v1499 = vld [vmem:[#allocation3 + $0x60] sm:$0xff]
        %v1500 = vld [vmem:[#allocation3 + $0x68] sm:$0xff]
        %v1501 = vld [vmem:[#allocation3 + $0x70] sm:$0xff]
        %v1502 = vld [vmem:[#allocation3 + $0x78] sm:$0xff]
        %v1503 = vadd.f32 %v1487, %v1440
        %v1504 = vadd.f32 %v1488, %v1443
        %v1505 = vadd.f32 %v1489, %v1446
        %v1506 = vadd.f32 %v1490, %v1449
        %v1507 = vadd.f32 %v1491, %v1452
        %v1508 = vadd.f32 %v1492, %v1455
        %v1509 = vadd.f32 %v1493, %v1458
        %v1510 = vadd.f32 %v1494, %v1461
        %v1511 = vadd.f32 %v1495, %v1464
        %v1512 = vadd.f32 %v1496, %v1467
        %v1513 = vadd.f32 %v1497, %v1470
        %v1514 = vadd.f32 %v1498, %v1473
        %v1515 = vadd.f32 %v1499, %v1476
        %v1516 = vadd.f32 %v1500, %v1479
        %v1517 = vadd.f32 %v1501, %v1482
        %v1518 = vadd.f32 %v1502, %v1485
        %1519 = vst [vmem:[#allocation3] sm:$0xff] %v1503
        %1520 = vst [vmem:[#allocation3 + $0x8] sm:$0xff] %v1504
        %1521 = vst [vmem:[#allocation3 + $0x10] sm:$0xff] %v1505
        %1522 = vst [vmem:[#allocation3 + $0x18] sm:$0xff] %v1506
        %1523 = vst [vmem:[#allocation3 + $0x20] sm:$0xff] %v1507
        %1524 = vst [vmem:[#allocation3 + $0x28] sm:$0xff] %v1508
        %1525 = vst [vmem:[#allocation3 + $0x30] sm:$0xff] %v1509
        %1526 = vst [vmem:[#allocation3 + $0x38] sm:$0xff] %v1510
        %1527 = vst [vmem:[#allocation3 + $0x40] sm:$0xff] %v1511
        %1528 = vst [vmem:[#allocation3 + $0x48] sm:$0xff] %v1512
        %1529 = vst [vmem:[#allocation3 + $0x50] sm:$0xff] %v1513
        %1530 = vst [vmem:[#allocation3 + $0x58] sm:$0xff] %v1514
        %1531 = vst [vmem:[#allocation3 + $0x60] sm:$0xff] %v1515
        %1532 = vst [vmem:[#allocation3 + $0x68] sm:$0xff] %v1516
        %1533 = vst [vmem:[#allocation3 + $0x70] sm:$0xff] %v1517
        %1534 = vst [vmem:[#allocation3 + $0x78] sm:$0xff] %v1518
        %s1535 = scalar_lea.vmem %s3, 32
        %v1536 = vld [vmem:[%s1535] sm:$0xf]
        %v1538 = vsel %vm348, %v1243, 0
        %v1541 = vsel %vm348, %v1244, 0
        %v1544 = vsel %vm458, %v1536, 0
        %1546 = vmatpush.msra.mxu0 0.0
        %1547 = vmatpush.msra.mxu0 0.0
        %1548 = vmatpush.msra.mxu0 0.0
        %1549 = vmatpush.msra.mxu0 0.0
        %1550 = vmatpush.msra.mxu0 0.0
        %1551 = vmatpush.msra.mxu0 0.0
        %1552 = vmatpush.msra.mxu0 0.0
        %1553 = vmatpush.msra.mxu0 0.0
        %1554 = vmatpush.msra.mxu0 0.0
        %1555 = vmatpush.msra.mxu0 0.0
        %1556 = vmatpush.msra.mxu0 0.0
        %1557 = vmatpush.msra.mxu0 0.0
        %1558 = vmatpush.msra.mxu0 0.0
        %1559 = vmatpush.msra.mxu0 0.0
        %1560 = vmatpush.msra.mxu0 0.0
        %1561 = vmatpush.msra.mxu0 %v1544
        %1562 = vmatmul.f32.gmra.mxu0 %v1260
        %v1563 = vpop.f32.mrf.mxu0
        %v1564 = vadd.f32 0.0, %v1563
        %1565 = vmatmul.f32.gmra.mxu0 %v1263
        %v1566 = vpop.f32.mrf.mxu0
        %v1567 = vadd.f32 0.0, %v1566
        %1568 = vmatmul.f32.gmra.mxu0 %v1266
        %v1569 = vpop.f32.mrf.mxu0
        %v1570 = vadd.f32 0.0, %v1569
        %1571 = vmatmul.f32.gmra.mxu0 %v1269
        %v1572 = vpop.f32.mrf.mxu0
        %v1573 = vadd.f32 0.0, %v1572
        %1574 = vmatmul.f32.gmra.mxu0 %v1272
        %v1575 = vpop.f32.mrf.mxu0
        %v1576 = vadd.f32 0.0, %v1575
        %1577 = vmatmul.f32.gmra.mxu0 %v1275
        %v1578 = vpop.f32.mrf.mxu0
        %v1579 = vadd.f32 0.0, %v1578
        %1580 = vmatmul.f32.gmra.mxu0 %v1278
        %v1581 = vpop.f32.mrf.mxu0
        %v1582 = vadd.f32 0.0, %v1581
        %1583 = vmatmul.f32.gmra.mxu0 %v1281
        %v1584 = vpop.f32.mrf.mxu0
        %v1585 = vadd.f32 0.0, %v1584
        %1586 = vmatmul.f32.gmra.mxu0 %v1284
        %v1587 = vpop.f32.mrf.mxu0
        %v1588 = vadd.f32 0.0, %v1587
        %1589 = vmatmul.f32.gmra.mxu0 %v1287
        %v1590 = vpop.f32.mrf.mxu0
        %v1591 = vadd.f32 0.0, %v1590
        %1592 = vmatmul.f32.gmra.mxu0 %v1290
        %v1593 = vpop.f32.mrf.mxu0
        %v1594 = vadd.f32 0.0, %v1593
        %1595 = vmatmul.f32.gmra.mxu0 %v1293
        %v1596 = vpop.f32.mrf.mxu0
        %v1597 = vadd.f32 0.0, %v1596
        %1598 = vmatmul.f32.gmra.mxu0 %v1414
        %v1599 = vpop.f32.mrf.mxu0
        %v1600 = vadd.f32 0.0, %v1599
        %1601 = vmatmul.f32.gmra.mxu0 %v1417
        %v1602 = vpop.f32.mrf.mxu0
        %v1603 = vadd.f32 0.0, %v1602
        %1604 = vmatmul.f32.gmra.mxu0 %v1538
        %v1605 = vpop.f32.mrf.mxu0
        %v1606 = vadd.f32 0.0, %v1605
        %1607 = vmatmul.f32.gmra.mxu0 %v1541
        %v1608 = vpop.f32.mrf.mxu0
        %v1609 = vadd.f32 0.0, %v1608
        %1610 = vdwg.mxu0
        %v1611 = vld [vmem:[#allocation3] sm:$0xff]
        %v1612 = vld [vmem:[#allocation3 + $0x8] sm:$0xff]
        %v1613 = vld [vmem:[#allocation3 + $0x10] sm:$0xff]
        %v1614 = vld [vmem:[#allocation3 + $0x18] sm:$0xff]
        %v1615 = vld [vmem:[#allocation3 + $0x20] sm:$0xff]
        %v1616 = vld [vmem:[#allocation3 + $0x28] sm:$0xff]
        %v1617 = vld [vmem:[#allocation3 + $0x30] sm:$0xff]
        %v1618 = vld [vmem:[#allocation3 + $0x38] sm:$0xff]
        %v1619 = vld [vmem:[#allocation3 + $0x40] sm:$0xff]
        %v1620 = vld [vmem:[#allocation3 + $0x48] sm:$0xff]
        %v1621 = vld [vmem:[#allocation3 + $0x50] sm:$0xff]
        %v1622 = vld [vmem:[#allocation3 + $0x58] sm:$0xff]
        %v1623 = vld [vmem:[#allocation3 + $0x60] sm:$0xff]
        %v1624 = vld [vmem:[#allocation3 + $0x68] sm:$0xff]
        %v1625 = vld [vmem:[#allocation3 + $0x70] sm:$0xff]
        %v1626 = vld [vmem:[#allocation3 + $0x78] sm:$0xff]
        %v1627 = vadd.f32 %v1611, %v1564
        %v1628 = vadd.f32 %v1612, %v1567
        %v1629 = vadd.f32 %v1613, %v1570
        %v1630 = vadd.f32 %v1614, %v1573
        %v1631 = vadd.f32 %v1615, %v1576
        %v1632 = vadd.f32 %v1616, %v1579
        %v1633 = vadd.f32 %v1617, %v1582
        %v1634 = vadd.f32 %v1618, %v1585
        %v1635 = vadd.f32 %v1619, %v1588
        %v1636 = vadd.f32 %v1620, %v1591
        %v1637 = vadd.f32 %v1621, %v1594
        %v1638 = vadd.f32 %v1622, %v1597
        %v1639 = vadd.f32 %v1623, %v1600
        %v1640 = vadd.f32 %v1624, %v1603
        %v1641 = vadd.f32 %v1625, %v1606
        %v1642 = vadd.f32 %v1626, %v1609
        %1643 = vst [vmem:[#allocation3] sm:$0xff] %v1627
        %1644 = vst [vmem:[#allocation3 + $0x8] sm:$0xff] %v1628
        %1645 = vst [vmem:[#allocation3 + $0x10] sm:$0xff] %v1629
        %1646 = vst [vmem:[#allocation3 + $0x18] sm:$0xff] %v1630
        %1647 = vst [vmem:[#allocation3 + $0x20] sm:$0xff] %v1631
        %1648 = vst [vmem:[#allocation3 + $0x28] sm:$0xff] %v1632
        %1649 = vst [vmem:[#allocation3 + $0x30] sm:$0xff] %v1633
        %1650 = vst [vmem:[#allocation3 + $0x38] sm:$0xff] %v1634
        %1651 = vst [vmem:[#allocation3 + $0x40] sm:$0xff] %v1635
        %1652 = vst [vmem:[#allocation3 + $0x48] sm:$0xff] %v1636
        %1653 = vst [vmem:[#allocation3 + $0x50] sm:$0xff] %v1637
        %1654 = vst [vmem:[#allocation3 + $0x58] sm:$0xff] %v1638
        %1655 = vst [vmem:[#allocation3 + $0x60] sm:$0xff] %v1639
        %1656 = vst [vmem:[#allocation3 + $0x68] sm:$0xff] %v1640
        %1657 = vst [vmem:[#allocation3 + $0x70] sm:$0xff] %v1641
        %1658 = vst [vmem:[#allocation3 + $0x78] sm:$0xff] %v1642
        %v1659 = vld [vmem:[#allocation3] sm:$0xff]
        %v1660 = vld [vmem:[#allocation3 + $0x8] sm:$0xff]
        %v1661 = vld [vmem:[#allocation3 + $0x10] sm:$0xff]
        %v1662 = vld [vmem:[#allocation3 + $0x18] sm:$0xff]
        %v1663 = vld [vmem:[#allocation3 + $0x20] sm:$0xff]
        %v1664 = vld [vmem:[#allocation3 + $0x28] sm:$0xff]
        %v1665 = vld [vmem:[#allocation3 + $0x30] sm:$0xff]
        %v1666 = vld [vmem:[#allocation3 + $0x38] sm:$0xff]
        %v1667 = vld [vmem:[#allocation3 + $0x40] sm:$0xff]
        %v1668 = vld [vmem:[#allocation3 + $0x48] sm:$0xff]
        %v1669 = vld [vmem:[#allocation3 + $0x50] sm:$0xff]
        %v1670 = vld [vmem:[#allocation3 + $0x58] sm:$0xff]
        %v1671 = vld [vmem:[#allocation3 + $0x60] sm:$0xff]
        %v1672 = vld [vmem:[#allocation3 + $0x68] sm:$0xff]
        %v1673 = vld [vmem:[#allocation3 + $0x70] sm:$0xff]
        %v1674 = vld [vmem:[#allocation3 + $0x78] sm:$0xff]
        %v1675 = vld [vmem:[%s4] sm:$0x1]
        %v1677 = vperm.slane %v1675, 0
        %v1679 = vadd.f32 %v1659, %v1677
        %v1680 = vadd.f32 %v1660, %v1677
        %v1681 = vadd.f32 %v1661, %v1677
        %v1682 = vadd.f32 %v1662, %v1677
        %v1683 = vadd.f32 %v1663, %v1677
        %v1684 = vadd.f32 %v1664, %v1677
        %v1685 = vadd.f32 %v1665, %v1677
        %v1686 = vadd.f32 %v1666, %v1677
        %v1687 = vadd.f32 %v1667, %v1677
        %v1688 = vadd.f32 %v1668, %v1677
        %v1689 = vadd.f32 %v1669, %v1677
        %v1690 = vadd.f32 %v1670, %v1677
        %v1691 = vadd.f32 %v1671, %v1677
        %v1692 = vadd.f32 %v1672, %v1677
        %v1693 = vadd.f32 %v1673, %v1677
        %v1694 = vadd.f32 %v1674, %v1677
        %v1695 = vmax.f32 %v1679, 0.0
        %v1696 = vmax.f32 %v1680, 0.0
        %v1697 = vmax.f32 %v1681, 0.0
        %v1698 = vmax.f32 %v1682, 0.0
        %v1699 = vmax.f32 %v1683, 0.0
        %v1700 = vmax.f32 %v1684, 0.0
        %v1701 = vmax.f32 %v1685, 0.0
        %v1702 = vmax.f32 %v1686, 0.0
        %v1703 = vmax.f32 %v1687, 0.0
        %v1704 = vmax.f32 %v1688, 0.0
        %v1705 = vmax.f32 %v1689, 0.0
        %v1706 = vmax.f32 %v1690, 0.0
        %v1707 = vmax.f32 %v1691, 0.0
        %v1708 = vmax.f32 %v1692, 0.0
        %v1709 = vmax.f32 %v1693, 0.0
        %v1710 = vmax.f32 %v1694, 0.0
        %1711 = vst [vmem:[%s294] sm:$0xff] %v1695
        %1712 = vst [vmem:[%s294 + $0x8] sm:$0xff] %v1696
        %1713 = vst [vmem:[%s294 + $0x10] sm:$0xff] %v1697
        %1714 = vst [vmem:[%s294 + $0x18] sm:$0xff] %v1698
        %1715 = vst [vmem:[%s294 + $0x20] sm:$0xff] %v1699
        %1716 = vst [vmem:[%s294 + $0x28] sm:$0xff] %v1700
        %1717 = vst [vmem:[%s294 + $0x30] sm:$0xff] %v1701
        %1718 = vst [vmem:[%s294 + $0x38] sm:$0xff] %v1702
        %1719 = vst [vmem:[%s294 + $0x40] sm:$0xff] %v1703
        %1720 = vst [vmem:[%s294 + $0x48] sm:$0xff] %v1704
        %1721 = vst [vmem:[%s294 + $0x50] sm:$0xff] %v1705
        %1722 = vst [vmem:[%s294 + $0x58] sm:$0xff] %v1706
        %1723 = vst [vmem:[%s294 + $0x60] sm:$0xff] %v1707
        %1724 = vst [vmem:[%s294 + $0x68] sm:$0xff] %v1708
        %1725 = vst [vmem:[%s294 + $0x70] sm:$0xff] %v1709
        %1726 = vst [vmem:[%s294 + $0x78] sm:$0xff] %v1710
        %s1727 = sand.u32 %s167, 1
        %s1728 = scalar_lea.sflag [#allocation5], %s1727
        %s1729 = sand.u32 %s167, 1
        %s1730 = smul.addr %s1729, 128
        %s1731 = scalar_lea.vmem [#allocation4], %s1730
        // Predicated region
        $region41: #{tpu_custom_call.1} parent=39 // pred_check
          %p1732 = pneg %p177
        $region42: #{tpu_custom_call.1} parent=39 // pred_check_branch
          %1734 = sbr.rel (%p1732) target = $region44
        $region43: #{tpu_custom_call.1} parent=39 // pred_region
          %s1735 = smul.u32 8, %s24
          %1737 = vsyncadd %s1728, 0
          %s1738 = smul.addr %s1735, 2
          %s1739 = smul.addr %s23, 32
          %s1740 = sadd.s32 %s1738, %s1739
          %s1741 = smul.addr %s1740, 8
          %s1742 = scalar_lea.hbm %s5, %s1741
          %s1743 = sshll.u32 %s1731, 4
          %s1744 = int_to_ptr.vmem [resolvable:$true] %s1743
          %s1745 = sshll.u32 %s1742, 4
          %s1746 = int_to_ptr.hbm [resolvable:$true] %s1745
          %1751 = dma.vmem_to_hbm [thread:$0]  %s1744, 2048, %s1746, %s1728, 128, 128, 8
        $region44: #{tpu_custom_call.1} parent=39 // pred_fallthru
          _
      $region40: #{tpu_custom_call.1} parent=5 // pred_fallthru
        _
      %p1752 = scmp.le.s32.totalorder 2, %s14
      // Predicated region
      $region45: #{tpu_custom_call.1} parent=5 // pred_check
        %p1753 = pneg %p1752
      $region46: #{tpu_custom_call.1} parent=5 // pred_check_branch
        %1755 = sbr.rel (%p1753) target = $region48
      $region47: #{tpu_custom_call.1} parent=5 // pred_region
        %s1756 = ssub.s32 %s14, 2
        // Predicated region
        $region49: #{tpu_custom_call.1} parent=47 // pred_check
          %p1757 = pneg %p183
        $region50: #{tpu_custom_call.1} parent=47 // pred_check_branch
          %1759 = sbr.rel (%p1757) target = $region52
        $region51: #{tpu_custom_call.1} parent=47 // pred_region
          %s1760 = sand.u32 %s168, 1
          %s1761 = scalar_lea.sflag [#allocation5], %s1760
          %s1762 = sand.u32 %s168, 1
          %s1763 = smul.addr %s1762, 128
          %s1764 = scalar_lea.vmem [#allocation4], %s1763
          %1766 = dma.done %s1761, 2048
        $region52: #{tpu_custom_call.1} parent=47 // pred_fallthru
          _
      $region48: #{tpu_custom_call.1} parent=5 // pred_fallthru
        _
    $region6: #{tpu_custom_call.1} parent=1 // loop_footer
      %s18 = sadd.s32 1, %s14
    $region7: #{tpu_custom_call.1} parent=1 // loop_footer_branch
      %13 = sbr.rel target = $region3
    $region8: #{tpu_custom_call.1} parent=1 // loop_exit
      _
    %1767 = vsyncpa [#allocation5], 1
    %s1768 = scalar_lea.sflag [#allocation5], 1
    %1769 = vsyncpa %s1768, 1

</llo_original>
